<compile_context>
chip_gen: v7x
topology: tpu7x:2x2x1
jax: 0.10.0
libtpu: 0.0.40
codegen_flags: <defaults>
</compile_context>

<pallas_src>
import functools
import numpy as np
import jax
import jax.numpy as jnp
from jax.experimental import pallas as pl
from jax.experimental.pallas import tpu as pltpu


# ----------------------------------------------------------------------------
# Fused kernel: conv+ELU x3 (stride (2,1), pad 1) + width resize, per image
# ----------------------------------------------------------------------------
def _slicing_kernel(xp_ref, w1_ref, b1_ref, w2_ref, b2_ref, w3_ref, b3_ref,
                    mt_ref, o_ref, a1_ref, a2_ref, *, do_resize):
    """Fused Slicing forward for ONE image (grid is over the batch).

    xp_ref : (1, H+2, W+2, C0)    zero-padded input image, bf16
    wL_ref : (3, 3*C_{L-1}, C_L)  conv weights, kh-major, K index = kw*Cin + c, bf16
    bL_ref : (1, C_L)             conv bias, f32
    mt_ref : (out_w, W)           width interpolation matrix, f32
    o_ref  : (1, H3*out_w, C3)    output, f32
    a1_ref : (H1+2, W+2, C1)      VMEM scratch: padded layer-1 activation, f32
    a2_ref : (H2+2, W+2, C2)      VMEM scratch: padded layer-2 activation, f32
    """

    def conv_elu(xpad, w_ref, b_ref):
        # xpad: (H_in+2, W+2, C_in) zero-padded f32 value; stride (2,1), pad 1.
        Hp, Wp, C_in = xpad.shape
        H_out = (Hp - 2) // 2
        Wo = Wp - 2
        K = 3 * C_in

        # kw-grouped im2col: lane-concat the three width-shifted windows ONCE
        # per layer -> (Hp, Wo, 3*C_in).  K index order = kw*C_in + c, matching
        # the host-side weight packing.
        xcat = jnp.concatenate(
            [xpad[:, 0:Wo, :], xpad[:, 1:Wo + 1, :], xpad[:, 2:Wo + 2, :]],
            axis=-1)

        # Even / odd padded rows (stride 2 in H): pure leading-dim reshape.
        xr = xcat.reshape(Hp // 2, 2, Wo, K)
        xe = xr[:, 0]                                  # padded rows 0,2,4,...
        xo = xr[:, 1]                                  # padded rows 1,3,5,...

        def tap(rows, w_kh):
            # rows: (H_out, Wo, 3*C_in) -> one MXU matmul, f32 accumulate.
            xs = rows.reshape(H_out * Wo, K).astype(jnp.bfloat16)
            return jnp.dot(xs, w_kh, preferred_element_type=jnp.float32)

        # Output row h reads padded rows 2h (kh=0), 2h+1 (kh=1), 2h+2 (kh=2).
        acc = tap(xe[:H_out], w_ref[0])
        acc = acc + tap(xo[:H_out], w_ref[1])
        acc = acc + tap(xe[1:H_out + 1], w_ref[2])
        acc = acc + b_ref[...]                         # bias once per layer

        # ELU (alpha = 1).
        # TODO(synk): switch to jnp.expm1 for better precision near 0 once its
        # Mosaic lowering is confirmed on all target TPU generations.
        return jnp.where(acc > 0.0, acc,
                         jnp.exp(jnp.minimum(acc, 0.0)) - 1.0)

    def store_padded(a_ref, act, H_act, W_act):
        # Zero ONLY the 1-pixel border; the interior is fully overwritten.
        C = a_ref.shape[-1]
        zrow = jnp.zeros((1, W_act + 2, C), a_ref.dtype)
        zcol = jnp.zeros((H_act + 2, 1, C), a_ref.dtype)
        a_ref[0:1, :, :] = zrow
        a_ref[H_act + 1:H_act + 2, :, :] = zrow
        a_ref[:, 0:1, :] = zcol
        a_ref[:, W_act + 1:W_act + 2, :] = zcol
        a_ref[1:1 + H_act, 1:1 + W_act, :] = act.reshape(H_act, W_act, C)

    W = xp_ref.shape[2] - 2
    H1 = a1_ref.shape[0] - 2
    H2 = a2_ref.shape[0] - 2
    H3 = H2 // 2
    out_w = o_ref.shape[1] // H3

    # --- layer 1 -------------------------------------------------------------
    # Input travels HBM->VMEM as bf16 (half the DMA); unpack to f32 once so all
    # sublane-offset slicing happens on the f32 layout path.
    x0 = xp_ref[0].astype(jnp.float32)
    act1 = conv_elu(x0, w1_ref, b1_ref)                # (H1*W, C1) f32
    store_padded(a1_ref, act1, H1, W)

    # --- layer 2 -------------------------------------------------------------
    act2 = conv_elu(a1_ref[...], w2_ref, b2_ref)       # (H2*W, C2)
    store_padded(a2_ref, act2, H2, W)

    # --- layer 3 -------------------------------------------------------------
    act3 = conv_elu(a2_ref[...], w3_ref, b3_ref)       # (H3*W, C3)

    # --- wrap-pad + bilinear width resize + crop ------------------------------
    if do_resize:
        mt = mt_ref[...]                               # (out_w, W) f32
        outs = [jnp.dot(mt, act3[h * W:(h + 1) * W, :],
                        preferred_element_type=jnp.float32)
                for h in range(H3)]
        res = outs[0] if H3 == 1 else jnp.concatenate(outs, axis=0)
        o_ref[...] = res.reshape(o_ref.shape)
    else:
        o_ref[...] = act3.reshape(o_ref.shape)


# ----------------------------------------------------------------------------
# Interpolation matrix (precomputed on host with static shapes)
# ----------------------------------------------------------------------------
def _build_interp_matrix(W, out_w):
    """(out_w, W) matrix reproducing:
         cat([x[..., -1:], x, x[..., :1]], -1)   (wrap pad by 1 column)
         F.interpolate(..., size=(H, out_w + 2*factor), mode='bilinear',
                       align_corners=False)
         [..., factor:-factor]
    """
    factor = out_w // W
    W_in = W + 2
    W_tot = out_w + 2 * factor
    j = np.arange(W_tot, dtype=np.float64)
    src = (j + 0.5) * (W_in / W_tot) - 0.5           # align_corners=False
    src = np.maximum(src, 0.0)                       # PyTorch clamps negatives
    x0 = np.minimum(np.floor(src).astype(np.int64), W_in - 1)
    x1 = np.minimum(x0 + 1, W_in - 1)
    w1 = src - x0
    w0 = 1.0 - w1

    def orig(p):  # map wrap-padded column -> original column
        return W - 1 if p == 0 else (0 if p == W_in - 1 else p - 1)

    M = np.zeros((W_tot, W), dtype=np.float64)
    for jj in range(W_tot):
        M[jj, orig(int(x0[jj]))] += w0[jj]
        M[jj, orig(int(x1[jj]))] += w1[jj]
    return M[factor:factor + out_w]                  # crop [factor:-factor]


# ----------------------------------------------------------------------------
# Slicing.forward wrapper
# ----------------------------------------------------------------------------
def slicing_forward(x, params, out_w, interpolate=True):
    """x: (N, H, W, in_c) f32 NHWC.  params: 3 pairs (w, b), w = (3,3,Cin,Cout).
       Returns (N, H//8, out_w_eff, out_c) f32 NHWC."""
    N, H, W, C0 = x.shape
    assert H % 8 == 0, "H must be divisible by 8 (three stride-2 halvings)"
    (w1, b1), (w2, b2), (w3, b3) = params
    C1, C2, C3 = w1.shape[-1], w2.shape[-1], w3.shape[-1]
    H1, H2, H3 = H // 2, H // 4, H // 8

    do_resize = interpolate and (out_w != W)
    if do_resize:
        assert out_w % W == 0
        out_w_eff = out_w
        mt = jnp.asarray(_build_interp_matrix(W, out_w_eff), jnp.float32)
    else:
        out_w_eff = W
        mt = jnp.eye(W, dtype=jnp.float32)           # placeholder, unused

    # Single zero-pad of the input (pad=1), shipped as bf16 (half the DMA).
    xp = jnp.pad(x, ((0, 0), (1, 1), (1, 1), (0, 0))).astype(jnp.bfloat16)

    def pack_w(w):   # (3,3,Cin,Cout) -> (3, 3*Cin, Cout) bf16, kh-major
        return w.reshape(3, 3 * w.shape[2], w.shape[3]).astype(jnp.bfloat16)

    args = (xp,
            pack_w(w1), b1.reshape(1, C1).astype(jnp.float32),
            pack_w(w2), b2.reshape(1, C2).astype(jnp.float32),
            pack_w(w3), b3.reshape(1, C3).astype(jnp.float32),
            mt)

    # Advisory cost estimate (conv + resize FLOPs, ELU exps, HBM bytes).
    flops = 0
    transcendentals = 0
    for cin, cout, hout in ((C0, C1, H1), (C1, C2, H2), (C2, C3, H3)):
        flops += 2 * N * hout * W * 9 * cin * cout
        transcendentals += N * hout * W * cout
    if do_resize:
        flops += 2 * N * H3 * out_w_eff * W * C3
    weight_bytes = sum(3 * 3 * ci * co * 2 + co * 4
                       for ci, co in ((C0, C1), (C1, C2), (C2, C3)))
    bytes_accessed = (N * (H + 2) * (W + 2) * C0 * 2      # bf16 input
                      + weight_bytes
                      + out_w_eff * W * 4                 # resize matrix
                      + N * H3 * out_w_eff * C3 * 4)      # f32 output

    kernel = functools.partial(_slicing_kernel, do_resize=do_resize)

    out = pl.pallas_call(
        kernel,
        out_shape=jax.ShapeDtypeStruct((N, H3 * out_w_eff, C3), jnp.float32),
        grid=(N,),
        in_specs=[
            pl.BlockSpec((1, H + 2, W + 2, C0), lambda n: (n, 0, 0, 0)),
            pl.BlockSpec((3, 3 * C0, C1), lambda n: (0, 0, 0)),
            pl.BlockSpec((1, C1), lambda n: (0, 0)),
            pl.BlockSpec((3, 3 * C1, C2), lambda n: (0, 0, 0)),
            pl.BlockSpec((1, C2), lambda n: (0, 0)),
            pl.BlockSpec((3, 3 * C2, C3), lambda n: (0, 0, 0)),
            pl.BlockSpec((1, C3), lambda n: (0, 0)),
            pl.BlockSpec((out_w_eff, W), lambda n: (0, 0)),
        ],
        out_specs=pl.BlockSpec((1, H3 * out_w_eff, C3), lambda n: (n, 0, 0)),
        scratch_shapes=[
            pltpu.VMEM((H1 + 2, W + 2, C1), jnp.float32),
            pltpu.VMEM((H2 + 2, W + 2, C2), jnp.float32),
        ],
        compiler_params=pltpu.CompilerParams(
            dimension_semantics=("parallel",)),
        cost_estimate=pl.CostEstimate(
            flops=flops, transcendentals=transcendentals,
            bytes_accessed=bytes_accessed),
    )(*args)

    return out.reshape(N, H3, out_w_eff, C3)


def init_params(key, in_c, out_c):
    chans = [in_c, in_c // 2, in_c // 4, out_c]
    params = []
    keys = jax.random.split(key, 6)
    for i in range(3):
        ci, co = chans[i], chans[i + 1]
        w = 0.1 * jax.random.normal(keys[2 * i], (3, 3, ci, co), jnp.float32)
        b = 0.1 * jax.random.normal(keys[2 * i + 1], (co,), jnp.float32)
        params.append((w, b))
    return params


if __name__ == "__main__":
    key = jax.random.PRNGKey(0)
    k_x, k_p = jax.random.split(key)

    N, in_c, H, W = 2, 16, 16, 16      # NHWC input: (2, 16, 16, 16)
    out_c = 4
    out_w = 32                          # triggers interpolation (factor = 2)

    x = jax.random.normal(k_x, (N, H, W, in_c), jnp.float32)
    params = init_params(k_p, in_c, out_c)

    fwd = jax.jit(functools.partial(slicing_forward, out_w=out_w))
    y = fwd(x, params)
    jax.block_until_ready(y)

    # H 16->8->4->2, C 16->8->4->4, W stays 16, then width resized 16 -> 32.
    assert y.shape == (N, H // 8, out_w, out_c), y.shape
    assert bool(jnp.all(jnp.isfinite(y)))
    print("KERNEL_OK")
</pallas_src>

<mosaic_0001>
module attributes {stable_mosaic.version = 11 : i64} {
  func.func @_slicing_kernel(%arg0: i32, %arg1: memref<1x18x18x16xbf16, #tpu.memory_space<vmem>>, %arg2: memref<3x48x8xbf16, #tpu.memory_space<vmem>>, %arg3: memref<1x8xf32, #tpu.memory_space<vmem>>, %arg4: memref<3x24x4xbf16, #tpu.memory_space<vmem>>, %arg5: memref<1x4xf32, #tpu.memory_space<vmem>>, %arg6: memref<3x12x4xbf16, #tpu.memory_space<vmem>>, %arg7: memref<1x4xf32, #tpu.memory_space<vmem>>, %arg8: memref<32x16xf32, #tpu.memory_space<vmem>>, %arg9: memref<1x64x4xf32, #tpu.memory_space<vmem>>, %arg10: memref<10x18x8xf32, #tpu.memory_space<vmem>>, %arg11: memref<6x18x4xf32, #tpu.memory_space<vmem>>) attributes {dimension_semantics = [#tpu.dimension_semantics<parallel>], iteration_bounds = array<i64: 2>, scalar_prefetch = 0 : i64, scratch_operands = 2 : i64, tpu.core_type = #tpu.core_type<tc>, window_params = [{transform_indices = @transform_0, window_bounds = array<i64: 1, 18, 18, 16>}, {pipeline_mode = #tpu.pipeline_mode<synchronous>, transform_indices = @transform_1, window_bounds = array<i64: 3, 48, 8>}, {pipeline_mode = #tpu.pipeline_mode<synchronous>, transform_indices = @transform_2, window_bounds = array<i64: 1, 8>}, {pipeline_mode = #tpu.pipeline_mode<synchronous>, transform_indices = @transform_3, window_bounds = array<i64: 3, 24, 4>}, {pipeline_mode = #tpu.pipeline_mode<synchronous>, transform_indices = @transform_4, window_bounds = array<i64: 1, 4>}, {pipeline_mode = #tpu.pipeline_mode<synchronous>, transform_indices = @transform_5, window_bounds = array<i64: 3, 12, 4>}, {pipeline_mode = #tpu.pipeline_mode<synchronous>, transform_indices = @transform_6, window_bounds = array<i64: 1, 4>}, {pipeline_mode = #tpu.pipeline_mode<synchronous>, transform_indices = @transform_7, window_bounds = array<i64: 32, 16>}, {transform_indices = @transform_8, window_bounds = array<i64: 1, 64, 4>}]} {
    %c0 = arith.constant 0 : index
    %c0_0 = arith.constant 0 : index
    %c0_1 = arith.constant 0 : index
    %c0_2 = arith.constant 0 : index
    %0 = vector.load %arg1[%c0, %c0_0, %c0_1, %c0_2] : memref<1x18x18x16xbf16, #tpu.memory_space<vmem>>, vector<1x18x18x16xbf16>
    %1 = vector.shape_cast %0 : vector<1x18x18x16xbf16> to vector<18x18x16xbf16>
    %2 = arith.extf %1 : vector<18x18x16xbf16> to vector<18x18x16xf32>
    %3 = vector.extract_strided_slice %2 {offsets = [0, 0, 0], sizes = [18, 16, 16], strides = [1, 1, 1]} : vector<18x18x16xf32> to vector<18x16x16xf32>
    %4 = vector.extract_strided_slice %2 {offsets = [0, 1, 0], sizes = [18, 16, 16], strides = [1, 1, 1]} : vector<18x18x16xf32> to vector<18x16x16xf32>
    %5 = vector.extract_strided_slice %2 {offsets = [0, 2, 0], sizes = [18, 16, 16], strides = [1, 1, 1]} : vector<18x18x16xf32> to vector<18x16x16xf32>
    %6 = tpu.concatenate %3, %4, %5 in 2 : vector<18x16x16xf32>, vector<18x16x16xf32>, vector<18x16x16xf32> -> vector<18x16x48xf32>
    %7 = vector.shape_cast %6 : vector<18x16x48xf32> to vector<9x2x16x48xf32>
    %8 = vector.extract_strided_slice %7 {offsets = [0, 0, 0, 0], sizes = [9, 1, 16, 48], strides = [1, 1, 1, 1]} : vector<9x2x16x48xf32> to vector<9x1x16x48xf32>
    %9 = vector.shape_cast %8 : vector<9x1x16x48xf32> to vector<9x16x48xf32>
    %10 = vector.extract_strided_slice %7 {offsets = [0, 1, 0, 0], sizes = [9, 1, 16, 48], strides = [1, 1, 1, 1]} : vector<9x2x16x48xf32> to vector<9x1x16x48xf32>
    %11 = vector.shape_cast %10 : vector<9x1x16x48xf32> to vector<9x16x48xf32>
    %12 = vector.extract_strided_slice %9 {offsets = [0, 0, 0], sizes = [8, 16, 48], strides = [1, 1, 1]} : vector<9x16x48xf32> to vector<8x16x48xf32>
    %c0_3 = arith.constant 0 : index
    %c0_4 = arith.constant 0 : index
    %c0_5 = arith.constant 0 : index
    %13 = vector.load %arg2[%c0_3, %c0_4, %c0_5] : memref<3x48x8xbf16, #tpu.memory_space<vmem>>, vector<1x48x8xbf16>
    %14 = vector.shape_cast %13 : vector<1x48x8xbf16> to vector<48x8xbf16>
    %15 = vector.shape_cast %12 : vector<8x16x48xf32> to vector<128x48xf32>
    %16 = arith.truncf %15 : vector<128x48xf32> to vector<128x48xbf16>
    %cst = arith.constant dense<0.000000e+00> : vector<128x8xf32>
    %17 = tpu.matmul %16, %14, %cst {dimension_numbers = #tpu.dot_dimension_numbers<[1], [0], [0], [1], [0, 0, 1, 1], [], []>} : vector<128x48xbf16>, vector<48x8xbf16>, vector<128x8xf32> -> vector<128x8xf32>
    %18 = vector.extract_strided_slice %11 {offsets = [0, 0, 0], sizes = [8, 16, 48], strides = [1, 1, 1]} : vector<9x16x48xf32> to vector<8x16x48xf32>
    %c1 = arith.constant 1 : index
    %c0_6 = arith.constant 0 : index
    %c0_7 = arith.constant 0 : index
    %19 = vector.load %arg2[%c1, %c0_6, %c0_7] : memref<3x48x8xbf16, #tpu.memory_space<vmem>>, vector<1x48x8xbf16>
    %20 = vector.shape_cast %19 : vector<1x48x8xbf16> to vector<48x8xbf16>
    %21 = vector.shape_cast %18 : vector<8x16x48xf32> to vector<128x48xf32>
    %22 = arith.truncf %21 : vector<128x48xf32> to vector<128x48xbf16>
    %cst_8 = arith.constant dense<0.000000e+00> : vector<128x8xf32>
    %23 = tpu.matmul %22, %20, %cst_8 {dimension_numbers = #tpu.dot_dimension_numbers<[1], [0], [0], [1], [0, 0, 1, 1], [], []>} : vector<128x48xbf16>, vector<48x8xbf16>, vector<128x8xf32> -> vector<128x8xf32>
    %24 = arith.addf %17, %23 : vector<128x8xf32>
    %25 = vector.extract_strided_slice %9 {offsets = [1, 0, 0], sizes = [8, 16, 48], strides = [1, 1, 1]} : vector<9x16x48xf32> to vector<8x16x48xf32>
    %c2 = arith.constant 2 : index
    %c0_9 = arith.constant 0 : index
    %c0_10 = arith.constant 0 : index
    %26 = vector.load %arg2[%c2, %c0_9, %c0_10] : memref<3x48x8xbf16, #tpu.memory_space<vmem>>, vector<1x48x8xbf16>
    %27 = vector.shape_cast %26 : vector<1x48x8xbf16> to vector<48x8xbf16>
    %28 = vector.shape_cast %25 : vector<8x16x48xf32> to vector<128x48xf32>
    %29 = arith.truncf %28 : vector<128x48xf32> to vector<128x48xbf16>
    %cst_11 = arith.constant dense<0.000000e+00> : vector<128x8xf32>
    %30 = tpu.matmul %29, %27, %cst_11 {dimension_numbers = #tpu.dot_dimension_numbers<[1], [0], [0], [1], [0, 0, 1, 1], [], []>} : vector<128x48xbf16>, vector<48x8xbf16>, vector<128x8xf32> -> vector<128x8xf32>
    %31 = arith.addf %24, %30 : vector<128x8xf32>
    %c0_12 = arith.constant 0 : index
    %c0_13 = arith.constant 0 : index
    %32 = vector.load %arg3[%c0_12, %c0_13] : memref<1x8xf32, #tpu.memory_space<vmem>>, vector<1x8xf32>
    %33 = vector.broadcast %32 : vector<1x8xf32> to vector<128x8xf32>
    %34 = arith.addf %31, %33 : vector<128x8xf32>
    %cst_14 = arith.constant 0.000000e+00 : f32
    %35 = vector.broadcast %cst_14 : f32 to vector<128x8xf32>
    %36 = arith.cmpf ogt, %34, %35 : vector<128x8xf32>
    %cst_15 = arith.constant 0.000000e+00 : f32
    %37 = vector.broadcast %cst_15 : f32 to vector<128x8xf32>
    %38 = arith.minimumf %34, %37 : vector<128x8xf32>
    %39 = math.exp %38 : vector<128x8xf32>
    %cst_16 = arith.constant 1.000000e+00 : f32
    %40 = vector.broadcast %cst_16 : f32 to vector<128x8xf32>
    %41 = arith.subf %39, %40 : vector<128x8xf32>
    %42 = arith.select %36, %34, %41 : vector<128x8xi1>, vector<128x8xf32>
    %cst_17 = arith.constant 0.000000e+00 : f32
    %43 = vector.broadcast %cst_17 : f32 to vector<1x18x8xf32>
    %cst_18 = arith.constant 0.000000e+00 : f32
    %44 = vector.broadcast %cst_18 : f32 to vector<10x1x8xf32>
    %c0_19 = arith.constant 0 : index
    %c0_20 = arith.constant 0 : index
    %c0_21 = arith.constant 0 : index
    %45 = vector.load %arg10[%c0_19, %c0_20, %c0_21] : memref<10x18x8xf32, #tpu.memory_space<vmem>>, vector<1x18x8xf32>
    tpu.vector_store %arg10[%c0_19, %c0_20, %c0_21], %43 {strides = array<i32>} : memref<10x18x8xf32, #tpu.memory_space<vmem>>, vector<1x18x8xf32>,
    %c9 = arith.constant 9 : index
    %c0_22 = arith.constant 0 : index
    %c0_23 = arith.constant 0 : index
    %46 = vector.load %arg10[%c9, %c0_22, %c0_23] : memref<10x18x8xf32, #tpu.memory_space<vmem>>, vector<1x18x8xf32>
    tpu.vector_store %arg10[%c9, %c0_22, %c0_23], %43 {strides = array<i32>} : memref<10x18x8xf32, #tpu.memory_space<vmem>>, vector<1x18x8xf32>,
    %c0_24 = arith.constant 0 : index
    %c0_25 = arith.constant 0 : index
    %c0_26 = arith.constant 0 : index
    %47 = vector.load %arg10[%c0_24, %c0_25, %c0_26] : memref<10x18x8xf32, #tpu.memory_space<vmem>>, vector<10x1x8xf32>
    tpu.vector_store %arg10[%c0_24, %c0_25, %c0_26], %44 {strides = array<i32>} : memref<10x18x8xf32, #tpu.memory_space<vmem>>, vector<10x1x8xf32>,
    %c0_27 = arith.constant 0 : index
    %c17 = arith.constant 17 : index
    %c0_28 = arith.constant 0 : index
    %48 = vector.load %arg10[%c0_27, %c17, %c0_28] : memref<10x18x8xf32, #tpu.memory_space<vmem>>, vector<10x1x8xf32>
    tpu.vector_store %arg10[%c0_27, %c17, %c0_28], %44 {strides = array<i32>} : memref<10x18x8xf32, #tpu.memory_space<vmem>>, vector<10x1x8xf32>,
    %49 = vector.shape_cast %42 : vector<128x8xf32> to vector<8x16x8xf32>
    %c1_29 = arith.constant 1 : index
    %c1_30 = arith.constant 1 : index
    %c0_31 = arith.constant 0 : index
    %50 = vector.load %arg10[%c1_29, %c1_30, %c0_31] : memref<10x18x8xf32, #tpu.memory_space<vmem>>, vector<8x16x8xf32>
    tpu.vector_store %arg10[%c1_29, %c1_30, %c0_31], %49 {strides = array<i32>} : memref<10x18x8xf32, #tpu.memory_space<vmem>>, vector<8x16x8xf32>,
    %c0_32 = arith.constant 0 : index
    %c0_33 = arith.constant 0 : index
    %c0_34 = arith.constant 0 : index
    %51 = vector.load %arg10[%c0_32, %c0_33, %c0_34] : memref<10x18x8xf32, #tpu.memory_space<vmem>>, vector<10x18x8xf32>
    %52 = vector.extract_strided_slice %51 {offsets = [0, 0, 0], sizes = [10, 16, 8], strides = [1, 1, 1]} : vector<10x18x8xf32> to vector<10x16x8xf32>
    %53 = vector.extract_strided_slice %51 {offsets = [0, 1, 0], sizes = [10, 16, 8], strides = [1, 1, 1]} : vector<10x18x8xf32> to vector<10x16x8xf32>
    %54 = vector.extract_strided_slice %51 {offsets = [0, 2, 0], sizes = [10, 16, 8], strides = [1, 1, 1]} : vector<10x18x8xf32> to vector<10x16x8xf32>
    %55 = tpu.concatenate %52, %53, %54 in 2 : vector<10x16x8xf32>, vector<10x16x8xf32>, vector<10x16x8xf32> -> vector<10x16x24xf32>
    %56 = vector.shape_cast %55 : vector<10x16x24xf32> to vector<5x2x16x24xf32>
    %57 = vector.extract_strided_slice %56 {offsets = [0, 0, 0, 0], sizes = [5, 1, 16, 24], strides = [1, 1, 1, 1]} : vector<5x2x16x24xf32> to vector<5x1x16x24xf32>
    %58 = vector.shape_cast %57 : vector<5x1x16x24xf32> to vector<5x16x24xf32>
    %59 = vector.extract_strided_slice %56 {offsets = [0, 1, 0, 0], sizes = [5, 1, 16, 24], strides = [1, 1, 1, 1]} : vector<5x2x16x24xf32> to vector<5x1x16x24xf32>
    %60 = vector.shape_cast %59 : vector<5x1x16x24xf32> to vector<5x16x24xf32>
    %61 = vector.extract_strided_slice %58 {offsets = [0, 0, 0], sizes = [4, 16, 24], strides = [1, 1, 1]} : vector<5x16x24xf32> to vector<4x16x24xf32>
    %c0_35 = arith.constant 0 : index
    %c0_36 = arith.constant 0 : index
    %c0_37 = arith.constant 0 : index
    %62 = vector.load %arg4[%c0_35, %c0_36, %c0_37] : memref<3x24x4xbf16, #tpu.memory_space<vmem>>, vector<1x24x4xbf16>
    %63 = vector.shape_cast %62 : vector<1x24x4xbf16> to vector<24x4xbf16>
    %64 = vector.shape_cast %61 : vector<4x16x24xf32> to vector<64x24xf32>
    %65 = arith.truncf %64 : vector<64x24xf32> to vector<64x24xbf16>
    %cst_38 = arith.constant dense<0.000000e+00> : vector<64x4xf32>
    %66 = tpu.matmul %65, %63, %cst_38 {dimension_numbers = #tpu.dot_dimension_numbers<[1], [0], [0], [1], [0, 0, 1, 1], [], []>} : vector<64x24xbf16>, vector<24x4xbf16>, vector<64x4xf32> -> vector<64x4xf32>
    %67 = vector.extract_strided_slice %60 {offsets = [0, 0, 0], sizes = [4, 16, 24], strides = [1, 1, 1]} : vector<5x16x24xf32> to vector<4x16x24xf32>
    %c1_39 = arith.constant 1 : index
    %c0_40 = arith.constant 0 : index
    %c0_41 = arith.constant 0 : index
    %68 = vector.load %arg4[%c1_39, %c0_40, %c0_41] : memref<3x24x4xbf16, #tpu.memory_space<vmem>>, vector<1x24x4xbf16>
    %69 = vector.shape_cast %68 : vector<1x24x4xbf16> to vector<24x4xbf16>
    %70 = vector.shape_cast %67 : vector<4x16x24xf32> to vector<64x24xf32>
    %71 = arith.truncf %70 : vector<64x24xf32> to vector<64x24xbf16>
    %cst_42 = arith.constant dense<0.000000e+00> : vector<64x4xf32>
    %72 = tpu.matmul %71, %69, %cst_42 {dimension_numbers = #tpu.dot_dimension_numbers<[1], [0], [0], [1], [0, 0, 1, 1], [], []>} : vector<64x24xbf16>, vector<24x4xbf16>, vector<64x4xf32> -> vector<64x4xf32>
    %73 = arith.addf %66, %72 : vector<64x4xf32>
    %74 = vector.extract_strided_slice %58 {offsets = [1, 0, 0], sizes = [4, 16, 24], strides = [1, 1, 1]} : vector<5x16x24xf32> to vector<4x16x24xf32>
    %c2_43 = arith.constant 2 : index
    %c0_44 = arith.constant 0 : index
    %c0_45 = arith.constant 0 : index
    %75 = vector.load %arg4[%c2_43, %c0_44, %c0_45] : memref<3x24x4xbf16, #tpu.memory_space<vmem>>, vector<1x24x4xbf16>
    %76 = vector.shape_cast %75 : vector<1x24x4xbf16> to vector<24x4xbf16>
    %77 = vector.shape_cast %74 : vector<4x16x24xf32> to vector<64x24xf32>
    %78 = arith.truncf %77 : vector<64x24xf32> to vector<64x24xbf16>
    %cst_46 = arith.constant dense<0.000000e+00> : vector<64x4xf32>
    %79 = tpu.matmul %78, %76, %cst_46 {dimension_numbers = #tpu.dot_dimension_numbers<[1], [0], [0], [1], [0, 0, 1, 1], [], []>} : vector<64x24xbf16>, vector<24x4xbf16>, vector<64x4xf32> -> vector<64x4xf32>
    %80 = arith.addf %73, %79 : vector<64x4xf32>
    %c0_47 = arith.constant 0 : index
    %c0_48 = arith.constant 0 : index
    %81 = vector.load %arg5[%c0_47, %c0_48] : memref<1x4xf32, #tpu.memory_space<vmem>>, vector<1x4xf32>
    %82 = vector.broadcast %81 : vector<1x4xf32> to vector<64x4xf32>
    %83 = arith.addf %80, %82 : vector<64x4xf32>
    %cst_49 = arith.constant 0.000000e+00 : f32
    %84 = vector.broadcast %cst_49 : f32 to vector<64x4xf32>
    %85 = arith.cmpf ogt, %83, %84 : vector<64x4xf32>
    %cst_50 = arith.constant 0.000000e+00 : f32
    %86 = vector.broadcast %cst_50 : f32 to vector<64x4xf32>
    %87 = arith.minimumf %83, %86 : vector<64x4xf32>
    %88 = math.exp %87 : vector<64x4xf32>
    %cst_51 = arith.constant 1.000000e+00 : f32
    %89 = vector.broadcast %cst_51 : f32 to vector<64x4xf32>
    %90 = arith.subf %88, %89 : vector<64x4xf32>
    %91 = arith.select %85, %83, %90 : vector<64x4xi1>, vector<64x4xf32>
    %cst_52 = arith.constant 0.000000e+00 : f32
    %92 = vector.broadcast %cst_52 : f32 to vector<1x18x4xf32>
    %cst_53 = arith.constant 0.000000e+00 : f32
    %93 = vector.broadcast %cst_53 : f32 to vector<6x1x4xf32>
    %c0_54 = arith.constant 0 : index
    %c0_55 = arith.constant 0 : index
    %c0_56 = arith.constant 0 : index
    %94 = vector.load %arg11[%c0_54, %c0_55, %c0_56] : memref<6x18x4xf32, #tpu.memory_space<vmem>>, vector<1x18x4xf32>
    tpu.vector_store %arg11[%c0_54, %c0_55, %c0_56], %92 {strides = array<i32>} : memref<6x18x4xf32, #tpu.memory_space<vmem>>, vector<1x18x4xf32>,
    %c5 = arith.constant 5 : index
    %c0_57 = arith.constant 0 : index
    %c0_58 = arith.constant 0 : index
    %95 = vector.load %arg11[%c5, %c0_57, %c0_58] : memref<6x18x4xf32, #tpu.memory_space<vmem>>, vector<1x18x4xf32>
    tpu.vector_store %arg11[%c5, %c0_57, %c0_58], %92 {strides = array<i32>} : memref<6x18x4xf32, #tpu.memory_space<vmem>>, vector<1x18x4xf32>,
    %c0_59 = arith.constant 0 : index
    %c0_60 = arith.constant 0 : index
    %c0_61 = arith.constant 0 : index
    %96 = vector.load %arg11[%c0_59, %c0_60, %c0_61] : memref<6x18x4xf32, #tpu.memory_space<vmem>>, vector<6x1x4xf32>
    tpu.vector_store %arg11[%c0_59, %c0_60, %c0_61], %93 {strides = array<i32>} : memref<6x18x4xf32, #tpu.memory_space<vmem>>, vector<6x1x4xf32>,
    %c0_62 = arith.constant 0 : index
    %c17_63 = arith.constant 17 : index
    %c0_64 = arith.constant 0 : index
    %97 = vector.load %arg11[%c0_62, %c17_63, %c0_64] : memref<6x18x4xf32, #tpu.memory_space<vmem>>, vector<6x1x4xf32>
    tpu.vector_store %arg11[%c0_62, %c17_63, %c0_64], %93 {strides = array<i32>} : memref<6x18x4xf32, #tpu.memory_space<vmem>>, vector<6x1x4xf32>,
    %98 = vector.shape_cast %91 : vector<64x4xf32> to vector<4x16x4xf32>
    %c1_65 = arith.constant 1 : index
    %c1_66 = arith.constant 1 : index
    %c0_67 = arith.constant 0 : index
    %99 = vector.load %arg11[%c1_65, %c1_66, %c0_67] : memref<6x18x4xf32, #tpu.memory_space<vmem>>, vector<4x16x4xf32>
    tpu.vector_store %arg11[%c1_65, %c1_66, %c0_67], %98 {strides = array<i32>} : memref<6x18x4xf32, #tpu.memory_space<vmem>>, vector<4x16x4xf32>,
    %c0_68 = arith.constant 0 : index
    %c0_69 = arith.constant 0 : index
    %c0_70 = arith.constant 0 : index
    %100 = vector.load %arg11[%c0_68, %c0_69, %c0_70] : memref<6x18x4xf32, #tpu.memory_space<vmem>>, vector<6x18x4xf32>
    %101 = vector.extract_strided_slice %100 {offsets = [0, 0, 0], sizes = [6, 16, 4], strides = [1, 1, 1]} : vector<6x18x4xf32> to vector<6x16x4xf32>
    %102 = vector.extract_strided_slice %100 {offsets = [0, 1, 0], sizes = [6, 16, 4], strides = [1, 1, 1]} : vector<6x18x4xf32> to vector<6x16x4xf32>
    %103 = vector.extract_strided_slice %100 {offsets = [0, 2, 0], sizes = [6, 16, 4], strides = [1, 1, 1]} : vector<6x18x4xf32> to vector<6x16x4xf32>
    %104 = tpu.concatenate %101, %102, %103 in 2 : vector<6x16x4xf32>, vector<6x16x4xf32>, vector<6x16x4xf32> -> vector<6x16x12xf32>
    %105 = vector.shape_cast %104 : vector<6x16x12xf32> to vector<3x2x16x12xf32>
    %106 = vector.extract_strided_slice %105 {offsets = [0, 0, 0, 0], sizes = [3, 1, 16, 12], strides = [1, 1, 1, 1]} : vector<3x2x16x12xf32> to vector<3x1x16x12xf32>
    %107 = vector.shape_cast %106 : vector<3x1x16x12xf32> to vector<3x16x12xf32>
    %108 = vector.extract_strided_slice %105 {offsets = [0, 1, 0, 0], sizes = [3, 1, 16, 12], strides = [1, 1, 1, 1]} : vector<3x2x16x12xf32> to vector<3x1x16x12xf32>
    %109 = vector.shape_cast %108 : vector<3x1x16x12xf32> to vector<3x16x12xf32>
    %110 = vector.extract_strided_slice %107 {offsets = [0, 0, 0], sizes = [2, 16, 12], strides = [1, 1, 1]} : vector<3x16x12xf32> to vector<2x16x12xf32>
    %c0_71 = arith.constant 0 : index
    %c0_72 = arith.constant 0 : index
    %c0_73 = arith.constant 0 : index
    %111 = vector.load %arg6[%c0_71, %c0_72, %c0_73] : memref<3x12x4xbf16, #tpu.memory_space<vmem>>, vector<1x12x4xbf16>
    %112 = vector.shape_cast %111 : vector<1x12x4xbf16> to vector<12x4xbf16>
    %113 = vector.shape_cast %110 : vector<2x16x12xf32> to vector<32x12xf32>
    %114 = arith.truncf %113 : vector<32x12xf32> to vector<32x12xbf16>
    %cst_74 = arith.constant dense<0.000000e+00> : vector<32x4xf32>
    %115 = tpu.matmul %114, %112, %cst_74 {dimension_numbers = #tpu.dot_dimension_numbers<[1], [0], [0], [1], [0, 0, 1, 1], [], []>} : vector<32x12xbf16>, vector<12x4xbf16>, vector<32x4xf32> -> vector<32x4xf32>
    %116 = vector.extract_strided_slice %109 {offsets = [0, 0, 0], sizes = [2, 16, 12], strides = [1, 1, 1]} : vector<3x16x12xf32> to vector<2x16x12xf32>
    %c1_75 = arith.constant 1 : index
    %c0_76 = arith.constant 0 : index
    %c0_77 = arith.constant 0 : index
    %117 = vector.load %arg6[%c1_75, %c0_76, %c0_77] : memref<3x12x4xbf16, #tpu.memory_space<vmem>>, vector<1x12x4xbf16>
    %118 = vector.shape_cast %117 : vector<1x12x4xbf16> to vector<12x4xbf16>
    %119 = vector.shape_cast %116 : vector<2x16x12xf32> to vector<32x12xf32>
    %120 = arith.truncf %119 : vector<32x12xf32> to vector<32x12xbf16>
    %cst_78 = arith.constant dense<0.000000e+00> : vector<32x4xf32>
    %121 = tpu.matmul %120, %118, %cst_78 {dimension_numbers = #tpu.dot_dimension_numbers<[1], [0], [0], [1], [0, 0, 1, 1], [], []>} : vector<32x12xbf16>, vector<12x4xbf16>, vector<32x4xf32> -> vector<32x4xf32>
    %122 = arith.addf %115, %121 : vector<32x4xf32>
    %123 = vector.extract_strided_slice %107 {offsets = [1, 0, 0], sizes = [2, 16, 12], strides = [1, 1, 1]} : vector<3x16x12xf32> to vector<2x16x12xf32>
    %c2_79 = arith.constant 2 : index
    %c0_80 = arith.constant 0 : index
    %c0_81 = arith.constant 0 : index
    %124 = vector.load %arg6[%c2_79, %c0_80, %c0_81] : memref<3x12x4xbf16, #tpu.memory_space<vmem>>, vector<1x12x4xbf16>
    %125 = vector.shape_cast %124 : vector<1x12x4xbf16> to vector<12x4xbf16>
    %126 = vector.shape_cast %123 : vector<2x16x12xf32> to vector<32x12xf32>
    %127 = arith.truncf %126 : vector<32x12xf32> to vector<32x12xbf16>
    %cst_82 = arith.constant dense<0.000000e+00> : vector<32x4xf32>
    %128 = tpu.matmul %127, %125, %cst_82 {dimension_numbers = #tpu.dot_dimension_numbers<[1], [0], [0], [1], [0, 0, 1, 1], [], []>} : vector<32x12xbf16>, vector<12x4xbf16>, vector<32x4xf32> -> vector<32x4xf32>
    %129 = arith.addf %122, %128 : vector<32x4xf32>
    %c0_83 = arith.constant 0 : index
    %c0_84 = arith.constant 0 : index
    %130 = vector.load %arg7[%c0_83, %c0_84] : memref<1x4xf32, #tpu.memory_space<vmem>>, vector<1x4xf32>
    %131 = vector.broadcast %130 : vector<1x4xf32> to vector<32x4xf32>
    %132 = arith.addf %129, %131 : vector<32x4xf32>
    %cst_85 = arith.constant 0.000000e+00 : f32
    %133 = vector.broadcast %cst_85 : f32 to vector<32x4xf32>
    %134 = arith.cmpf ogt, %132, %133 : vector<32x4xf32>
    %cst_86 = arith.constant 0.000000e+00 : f32
    %135 = vector.broadcast %cst_86 : f32 to vector<32x4xf32>
    %136 = arith.minimumf %132, %135 : vector<32x4xf32>
    %137 = math.exp %136 : vector<32x4xf32>
    %cst_87 = arith.constant 1.000000e+00 : f32
    %138 = vector.broadcast %cst_87 : f32 to vector<32x4xf32>
    %139 = arith.subf %137, %138 : vector<32x4xf32>
    %140 = arith.select %134, %132, %139 : vector<32x4xi1>, vector<32x4xf32>
    %c0_88 = arith.constant 0 : index
    %c0_89 = arith.constant 0 : index
    %141 = vector.load %arg8[%c0_88, %c0_89] : memref<32x16xf32, #tpu.memory_space<vmem>>, vector<32x16xf32>
    %142 = vector.extract_strided_slice %140 {offsets = [0, 0], sizes = [16, 4], strides = [1, 1]} : vector<32x4xf32> to vector<16x4xf32>
    %cst_90 = arith.constant dense<0.000000e+00> : vector<32x4xf32>
    %143 = tpu.matmul %141, %142, %cst_90 {dimension_numbers = #tpu.dot_dimension_numbers<[1], [0], [0], [1], [0, 0, 1, 1], [], []>} : vector<32x16xf32>, vector<16x4xf32>, vector<32x4xf32> -> vector<32x4xf32>
    %144 = vector.extract_strided_slice %140 {offsets = [16, 0], sizes = [16, 4], strides = [1, 1]} : vector<32x4xf32> to vector<16x4xf32>
    %cst_91 = arith.constant dense<0.000000e+00> : vector<32x4xf32>
    %145 = tpu.matmul %141, %144, %cst_91 {dimension_numbers = #tpu.dot_dimension_numbers<[1], [0], [0], [1], [0, 0, 1, 1], [], []>} : vector<32x16xf32>, vector<16x4xf32>, vector<32x4xf32> -> vector<32x4xf32>
    %146 = tpu.concatenate %143, %145 in 0 : vector<32x4xf32>, vector<32x4xf32> -> vector<64x4xf32>
    %147 = vector.shape_cast %146 : vector<64x4xf32> to vector<1x64x4xf32>
    %c0_92 = arith.constant 0 : index
    %c0_93 = arith.constant 0 : index
    %c0_94 = arith.constant 0 : index
    %148 = vector.load %arg9[%c0_92, %c0_93, %c0_94] : memref<1x64x4xf32, #tpu.memory_space<vmem>>, vector<1x64x4xf32>
    tpu.vector_store %arg9[%c0_92, %c0_93, %c0_94], %147 {strides = array<i32>} : memref<1x64x4xf32, #tpu.memory_space<vmem>>, vector<1x64x4xf32>,
    return
  }
  func.func @transform_0(%arg0: i32) -> (i32, i32, i32, i32) {
    %c0_i32 = arith.constant 0 : i32
    %c0_i32_0 = arith.constant 0 : i32
    %c0_i32_1 = arith.constant 0 : i32
    %c0_i32_2 = arith.constant 0 : i32
    return %arg0, %c0_i32, %c0_i32_0, %c0_i32_1 : i32, i32, i32, i32
  }
  func.func @transform_1(%arg0: i32) -> (i32, i32, i32) {
    %c0_i32 = arith.constant 0 : i32
    %c0_i32_0 = arith.constant 0 : i32
    %c0_i32_1 = arith.constant 0 : i32
    %c0_i32_2 = arith.constant 0 : i32
    return %c0_i32, %c0_i32_0, %c0_i32_1 : i32, i32, i32
  }
  func.func @transform_2(%arg0: i32) -> (i32, i32) {
    %c0_i32 = arith.constant 0 : i32
    %c0_i32_0 = arith.constant 0 : i32
    %c0_i32_1 = arith.constant 0 : i32
    return %c0_i32, %c0_i32_0 : i32, i32
  }
  func.func @transform_3(%arg0: i32) -> (i32, i32, i32) {
    %c0_i32 = arith.constant 0 : i32
    %c0_i32_0 = arith.constant 0 : i32
    %c0_i32_1 = arith.constant 0 : i32
    %c0_i32_2 = arith.constant 0 : i32
    return %c0_i32, %c0_i32_0, %c0_i32_1 : i32, i32, i32
  }
  func.func @transform_4(%arg0: i32) -> (i32, i32) {
    %c0_i32 = arith.constant 0 : i32
    %c0_i32_0 = arith.constant 0 : i32
    %c0_i32_1 = arith.constant 0 : i32
    return %c0_i32, %c0_i32_0 : i32, i32
  }
  func.func @transform_5(%arg0: i32) -> (i32, i32, i32) {
    %c0_i32 = arith.constant 0 : i32
    %c0_i32_0 = arith.constant 0 : i32
    %c0_i32_1 = arith.constant 0 : i32
    %c0_i32_2 = arith.constant 0 : i32
    return %c0_i32, %c0_i32_0, %c0_i32_1 : i32, i32, i32
  }
  func.func @transform_6(%arg0: i32) -> (i32, i32) {
    %c0_i32 = arith.constant 0 : i32
    %c0_i32_0 = arith.constant 0 : i32
    %c0_i32_1 = arith.constant 0 : i32
    return %c0_i32, %c0_i32_0 : i32, i32
  }
  func.func @transform_7(%arg0: i32) -> (i32, i32) {
    %c0_i32 = arith.constant 0 : i32
    %c0_i32_0 = arith.constant 0 : i32
    %c0_i32_1 = arith.constant 0 : i32
    return %c0_i32, %c0_i32_0 : i32, i32
  }
  func.func @transform_8(%arg0: i32) -> (i32, i32, i32) {
    %c0_i32 = arith.constant 0 : i32
    %c0_i32_0 = arith.constant 0 : i32
    %c0_i32_1 = arith.constant 0 : i32
    return %arg0, %c0_i32, %c0_i32_0 : i32, i32, i32
  }
}

</mosaic_0001>

<llo_original>
// kernel: slicing_forward.1
$region0: #{slicing_forward.1}
  #allocation0 [shape = 'u32[]', space=smem, size = 0x4, offset = 0x4, fixed_abs, tag = 'smem constant byte address 0x4 - core index']
  #allocation1 [shape = 'u32[144,128]{1,0:T(1,128)}', space=vmem, size = 0x12000, scoped, tag = 'internal scratch']
  #allocation2 [shape = 'f32[10,18,8]{2,1,0:T(8,128)}', space=vmem, size = 0x1e000, scoped, tag = 'scratch operand']
  #allocation3 [shape = 'f32[6,18,4]{2,1,0:T(8,128)}', space=vmem, size = 0x12000, scoped, tag = 'scratch operand']
  %s0 = inlined_call_operand.vmem [shape: bf16[2,18,18,16], index: 0, kind: input, shape index: {}]
  %s1 = inlined_call_operand.vmem [shape: bf16[3,48,8], index: 1, kind: input, shape index: {}]
  %s2 = inlined_call_operand.vmem [shape: f32[1,8], index: 2, kind: input, shape index: {}]
  %s3 = inlined_call_operand.vmem [shape: bf16[3,24,4], index: 3, kind: input, shape index: {}]
  %s4 = inlined_call_operand.vmem [shape: f32[1,4], index: 4, kind: input, shape index: {}]
  %s5 = inlined_call_operand.vmem [shape: bf16[3,12,4], index: 5, kind: input, shape index: {}]
  %s6 = inlined_call_operand.vmem [shape: f32[1,4], index: 6, kind: input, shape index: {}]
  %s7 = inlined_call_operand.vmem [shape: f32[32,16], index: 7, kind: input, shape index: {}]
  %s8 = inlined_call_operand.vmem [shape: f32[2,64,4], index: 8, kind: output, shape index: {}]
  %s9 = sld [smem:[#allocation0]]
  $region65: #{slicing_forward.1} parent=0
    _
  %s11 = ssub.s32 1, %s9
  %s12 = scalar_select 0, %s11, %s9
  loop: start=0, step=1, limit=4
  $region2: #{slicing_forward.1} parent=0 // loop_pre_header
    _
  $region3: #{slicing_forward.1} parent=0 // loop_header
    %s14 = sphi 0, %s18
    %p15 = scmp.ge.s32.totalorder %s14, 4
    %s24 = sphi 0, %s26
    %s27 = sphi 0, %s24
    %s28 = sphi 0, %s27
    %s44 = sphi 0, %s28
    %s48 = sphi 0, %s48
    %s50 = sphi 0, %s48
    %s51 = sphi 0, %s50
    %s65 = sphi 0, %s51
    %s69 = sphi 0, %s69
    %s71 = sphi 0, %s69
    %s72 = sphi 0, %s71
    %s86 = sphi 0, %s72
    %s90 = sphi 0, %s90
    %s92 = sphi 0, %s90
    %s93 = sphi 0, %s92
    %s107 = sphi 0, %s93
    %s111 = sphi 0, %s111
    %s113 = sphi 0, %s111
    %s114 = sphi 0, %s113
    %s128 = sphi 0, %s114
    %s132 = sphi 0, %s132
    %s134 = sphi 0, %s132
    %s135 = sphi 0, %s134
    %s149 = sphi 0, %s135
    %s153 = sphi 0, %s153
    %s155 = sphi 0, %s153
    %s156 = sphi 0, %s155
    %s170 = sphi 0, %s156
    %s174 = sphi 0, %s174
    %s176 = sphi 0, %s174
    %s177 = sphi 0, %s176
    %s191 = sphi 0, %s177
    %s197 = sphi 0, %s199
    %s200 = sphi 0, %s197
    %s201 = sphi 0, %s200
    %s217 = sphi 0, %s201
  $region4: #{slicing_forward.1} parent=0 // loop_header_branch
    %17 = sbr.rel (%p15) target = $region8
  $region5: #{slicing_forward.1} parent=0 // loop_body
    %s19 = ssub.s32 %s14, 1
    %s20 = ssub.s32 %s14, 2
    %s21 = sadd.s32 %s14, 1
    %s22 = ssub.s32 %s14, %s21
    %p23 = scmp.eq.s32.totalorder %s22, 0
    %s25 = sadd.s32 %s24, 1
    %s26 = scalar_select %p23, %s24, %s25
    %p29 = pneg %p23
    %p30 = scmp.eq.s32.totalorder %s14, 1
    %p31 = por %p29, %p30
    %p32 = scmp.ne.s32.totalorder %s24, %s27
    %p33 = scmp.eq.s32.totalorder %s14, 0
    %p34 = por %p32, %p33
    %p35 = scmp.ne.s32.totalorder %s24, %s27
    %p36 = scmp.eq.s32.totalorder %s19, 1
    %p37 = por %p35, %p36
    %p38 = scmp.ne.s32.totalorder %s27, %s28
    %p39 = scmp.eq.s32.totalorder %s19, 0
    %p40 = por %p38, %p39
    %p41 = scmp.ne.s32.totalorder %s27, %s28
    %p42 = scmp.eq.s32.totalorder %s20, 1
    %p43 = por %p41, %p42
    %p45 = scmp.ne.s32.totalorder %s28, %s44
    %p46 = scmp.eq.s32.totalorder %s20, 0
    %p47 = por %p45, %p46
    %s49 = sadd.s32 %s48, 1
    %p52 = scmp.eq.s32.totalorder %s14, 1
    %p53 = scmp.ne.s32.totalorder %s48, %s50
    %p54 = scmp.eq.s32.totalorder %s14, 0
    %p55 = por %p53, %p54
    %p56 = scmp.ne.s32.totalorder %s48, %s50
    %p57 = scmp.eq.s32.totalorder %s19, 1
    %p58 = por %p56, %p57
    %p59 = scmp.ne.s32.totalorder %s50, %s51
    %p60 = scmp.eq.s32.totalorder %s19, 0
    %p61 = por %p59, %p60
    %p62 = scmp.ne.s32.totalorder %s50, %s51
    %p63 = scmp.eq.s32.totalorder %s20, 1
    %p64 = por %p62, %p63
    %p66 = scmp.ne.s32.totalorder %s51, %s65
    %p67 = scmp.eq.s32.totalorder %s20, 0
    %p68 = por %p66, %p67
    %s70 = sadd.s32 %s69, 1
    %p73 = scmp.eq.s32.totalorder %s14, 1
    %p74 = scmp.ne.s32.totalorder %s69, %s71
    %p75 = scmp.eq.s32.totalorder %s14, 0
    %p76 = por %p74, %p75
    %p77 = scmp.ne.s32.totalorder %s69, %s71
    %p78 = scmp.eq.s32.totalorder %s19, 1
    %p79 = por %p77, %p78
    %p80 = scmp.ne.s32.totalorder %s71, %s72
    %p81 = scmp.eq.s32.totalorder %s19, 0
    %p82 = por %p80, %p81
    %p83 = scmp.ne.s32.totalorder %s71, %s72
    %p84 = scmp.eq.s32.totalorder %s20, 1
    %p85 = por %p83, %p84
    %p87 = scmp.ne.s32.totalorder %s72, %s86
    %p88 = scmp.eq.s32.totalorder %s20, 0
    %p89 = por %p87, %p88
    %s91 = sadd.s32 %s90, 1
    %p94 = scmp.eq.s32.totalorder %s14, 1
    %p95 = scmp.ne.s32.totalorder %s90, %s92
    %p96 = scmp.eq.s32.totalorder %s14, 0
    %p97 = por %p95, %p96
    %p98 = scmp.ne.s32.totalorder %s90, %s92
    %p99 = scmp.eq.s32.totalorder %s19, 1
    %p100 = por %p98, %p99
    %p101 = scmp.ne.s32.totalorder %s92, %s93
    %p102 = scmp.eq.s32.totalorder %s19, 0
    %p103 = por %p101, %p102
    %p104 = scmp.ne.s32.totalorder %s92, %s93
    %p105 = scmp.eq.s32.totalorder %s20, 1
    %p106 = por %p104, %p105
    %p108 = scmp.ne.s32.totalorder %s93, %s107
    %p109 = scmp.eq.s32.totalorder %s20, 0
    %p110 = por %p108, %p109
    %s112 = sadd.s32 %s111, 1
    %p115 = scmp.eq.s32.totalorder %s14, 1
    %p116 = scmp.ne.s32.totalorder %s111, %s113
    %p117 = scmp.eq.s32.totalorder %s14, 0
    %p118 = por %p116, %p117
    %p119 = scmp.ne.s32.totalorder %s111, %s113
    %p120 = scmp.eq.s32.totalorder %s19, 1
    %p121 = por %p119, %p120
    %p122 = scmp.ne.s32.totalorder %s113, %s114
    %p123 = scmp.eq.s32.totalorder %s19, 0
    %p124 = por %p122, %p123
    %p125 = scmp.ne.s32.totalorder %s113, %s114
    %p126 = scmp.eq.s32.totalorder %s20, 1
    %p127 = por %p125, %p126
    %p129 = scmp.ne.s32.totalorder %s114, %s128
    %p130 = scmp.eq.s32.totalorder %s20, 0
    %p131 = por %p129, %p130
    %s133 = sadd.s32 %s132, 1
    %p136 = scmp.eq.s32.totalorder %s14, 1
    %p137 = scmp.ne.s32.totalorder %s132, %s134
    %p138 = scmp.eq.s32.totalorder %s14, 0
    %p139 = por %p137, %p138
    %p140 = scmp.ne.s32.totalorder %s132, %s134
    %p141 = scmp.eq.s32.totalorder %s19, 1
    %p142 = por %p140, %p141
    %p143 = scmp.ne.s32.totalorder %s134, %s135
    %p144 = scmp.eq.s32.totalorder %s19, 0
    %p145 = por %p143, %p144
    %p146 = scmp.ne.s32.totalorder %s134, %s135
    %p147 = scmp.eq.s32.totalorder %s20, 1
    %p148 = por %p146, %p147
    %p150 = scmp.ne.s32.totalorder %s135, %s149
    %p151 = scmp.eq.s32.totalorder %s20, 0
    %p152 = por %p150, %p151
    %s154 = sadd.s32 %s153, 1
    %p157 = scmp.eq.s32.totalorder %s14, 1
    %p158 = scmp.ne.s32.totalorder %s153, %s155
    %p159 = scmp.eq.s32.totalorder %s14, 0
    %p160 = por %p158, %p159
    %p161 = scmp.ne.s32.totalorder %s153, %s155
    %p162 = scmp.eq.s32.totalorder %s19, 1
    %p163 = por %p161, %p162
    %p164 = scmp.ne.s32.totalorder %s155, %s156
    %p165 = scmp.eq.s32.totalorder %s19, 0
    %p166 = por %p164, %p165
    %p167 = scmp.ne.s32.totalorder %s155, %s156
    %p168 = scmp.eq.s32.totalorder %s20, 1
    %p169 = por %p167, %p168
    %p171 = scmp.ne.s32.totalorder %s156, %s170
    %p172 = scmp.eq.s32.totalorder %s20, 0
    %p173 = por %p171, %p172
    %s175 = sadd.s32 %s174, 1
    %p178 = scmp.eq.s32.totalorder %s14, 1
    %p179 = scmp.ne.s32.totalorder %s174, %s176
    %p180 = scmp.eq.s32.totalorder %s14, 0
    %p181 = por %p179, %p180
    %p182 = scmp.ne.s32.totalorder %s174, %s176
    %p183 = scmp.eq.s32.totalorder %s19, 1
    %p184 = por %p182, %p183
    %p185 = scmp.ne.s32.totalorder %s176, %s177
    %p186 = scmp.eq.s32.totalorder %s19, 0
    %p187 = por %p185, %p186
    %p188 = scmp.ne.s32.totalorder %s176, %s177
    %p189 = scmp.eq.s32.totalorder %s20, 1
    %p190 = por %p188, %p189
    %p192 = scmp.ne.s32.totalorder %s177, %s191
    %p193 = scmp.eq.s32.totalorder %s20, 0
    %p194 = por %p192, %p193
    %s195 = ssub.s32 %s14, %s21
    %p196 = scmp.eq.s32.totalorder %s195, 0
    %s198 = sadd.s32 %s197, 1
    %s199 = scalar_select %p196, %s197, %s198
    %p202 = pneg %p196
    %p203 = scmp.eq.s32.totalorder %s14, 1
    %p204 = por %p202, %p203
    %p205 = scmp.ne.s32.totalorder %s197, %s200
    %p206 = scmp.eq.s32.totalorder %s14, 0
    %p207 = por %p205, %p206
    %p208 = scmp.ne.s32.totalorder %s197, %s200
    %p209 = scmp.eq.s32.totalorder %s19, 1
    %p210 = por %p208, %p209
    %p211 = scmp.ne.s32.totalorder %s200, %s201
    %p212 = scmp.eq.s32.totalorder %s19, 0
    %p213 = por %p211, %p212
    %p214 = scmp.ne.s32.totalorder %s200, %s201
    %p215 = scmp.eq.s32.totalorder %s20, 1
    %p216 = por %p214, %p215
    %p218 = scmp.ne.s32.totalorder %s201, %s217
    %p219 = scmp.eq.s32.totalorder %s20, 0
    %p220 = por %p218, %p219
    %p221 = scmp.le.s32.totalorder 1, %s14
    %p222 = scmp.lt.s32.totalorder %s14, 3
    %p223 = pnand %p221, %p222
    %p224 = pneg %p223
    // Predicated region
    $region9: #{slicing_forward.1} parent=5 // pred_check
      _
    $region10: #{slicing_forward.1} parent=5 // pred_check_branch
      %226 = sbr.rel (%p223) target = $region12
    $region11: #{slicing_forward.1} parent=5 // pred_region
      %s227 = ssub.s32 %s14, 1
      // Predicated region
      $region13: #{slicing_forward.1} parent=11 // pred_check
        %p228 = pneg %p61
      $region14: #{slicing_forward.1} parent=11 // pred_check_branch
        %230 = sbr.rel (%p228) target = $region16
      $region15: #{slicing_forward.1} parent=11 // pred_region
        _
      $region16: #{slicing_forward.1} parent=11 // pred_fallthru
        _
      // Predicated region
      $region17: #{slicing_forward.1} parent=11 // pred_check
        %p231 = pneg %p82
      $region18: #{slicing_forward.1} parent=11 // pred_check_branch
        %233 = sbr.rel (%p231) target = $region20
      $region19: #{slicing_forward.1} parent=11 // pred_region
        _
      $region20: #{slicing_forward.1} parent=11 // pred_fallthru
        _
      // Predicated region
      $region21: #{slicing_forward.1} parent=11 // pred_check
        %p234 = pneg %p103
      $region22: #{slicing_forward.1} parent=11 // pred_check_branch
        %236 = sbr.rel (%p234) target = $region24
      $region23: #{slicing_forward.1} parent=11 // pred_region
        _
      $region24: #{slicing_forward.1} parent=11 // pred_fallthru
        _
      // Predicated region
      $region25: #{slicing_forward.1} parent=11 // pred_check
        %p237 = pneg %p124
      $region26: #{slicing_forward.1} parent=11 // pred_check_branch
        %239 = sbr.rel (%p237) target = $region28
      $region27: #{slicing_forward.1} parent=11 // pred_region
        _
      $region28: #{slicing_forward.1} parent=11 // pred_fallthru
        _
      // Predicated region
      $region29: #{slicing_forward.1} parent=11 // pred_check
        %p240 = pneg %p145
      $region30: #{slicing_forward.1} parent=11 // pred_check_branch
        %242 = sbr.rel (%p240) target = $region32
      $region31: #{slicing_forward.1} parent=11 // pred_region
        _
      $region32: #{slicing_forward.1} parent=11 // pred_fallthru
        _
      // Predicated region
      $region33: #{slicing_forward.1} parent=11 // pred_check
        %p243 = pneg %p166
      $region34: #{slicing_forward.1} parent=11 // pred_check_branch
        %245 = sbr.rel (%p243) target = $region36
      $region35: #{slicing_forward.1} parent=11 // pred_region
        _
      $region36: #{slicing_forward.1} parent=11 // pred_fallthru
        _
      // Predicated region
      $region37: #{slicing_forward.1} parent=11 // pred_check
        %p246 = pneg %p187
      $region38: #{slicing_forward.1} parent=11 // pred_check_branch
        %248 = sbr.rel (%p246) target = $region40
      $region39: #{slicing_forward.1} parent=11 // pred_region
        _
      $region40: #{slicing_forward.1} parent=11 // pred_fallthru
        _
    $region12: #{slicing_forward.1} parent=5 // pred_fallthru
      _
    %p249 = scmp.lt.s32.totalorder %s14, 2
    // Predicated region
    $region41: #{slicing_forward.1} parent=5 // pred_check
      %p250 = pneg %p249
    $region42: #{slicing_forward.1} parent=5 // pred_check_branch
      %252 = sbr.rel (%p250) target = $region44
    $region43: #{slicing_forward.1} parent=5 // pred_region
      // Predicated region
      $region45: #{slicing_forward.1} parent=43 // pred_check
        %p253 = pneg %p34
      $region46: #{slicing_forward.1} parent=43 // pred_check_branch
        %255 = sbr.rel (%p253) target = $region48
      $region47: #{slicing_forward.1} parent=43 // pred_region
        %p256 = scmp.lt.s32.totalorder %s14, 1
        %s257 = scalar_select %p256, %s14, 1
        %s258 = smul.addr %s257, 54
        %s259 = smul.addr %s258, 4
        %s260 = scalar_lea.vmem %s0, %s259
      $region48: #{slicing_forward.1} parent=43 // pred_fallthru
        _
    $region44: #{slicing_forward.1} parent=5 // pred_fallthru
      _
    %p261 = scmp.le.s32.totalorder 1, %s14
    %p262 = scmp.lt.s32.totalorder %s14, 3
    %p263 = pnand %p261, %p262
    %p264 = pneg %p263
    // Predicated region
    $region49: #{slicing_forward.1} parent=5 // pred_check
      _
    $region50: #{slicing_forward.1} parent=5 // pred_check_branch
      %266 = sbr.rel (%p263) target = $region52
    $region51: #{slicing_forward.1} parent=5 // pred_region
      %s267 = ssub.s32 %s14, 1
      %p268 = scmp.lt.s32.totalorder %s19, 1
      %s269 = scalar_select %p268, %s19, 1
      %s270 = smul.addr %s269, 54
      %s271 = smul.addr %s270, 4
      %s272 = scalar_lea.vmem %s0, %s271
      %p273 = pneg %p40
      %p274 = pneg %p37
      %p275 = pneg %p61
      %p276 = pneg %p58
      %p277 = pneg %p82
      %p278 = pneg %p79
      %p279 = pneg %p103
      %p280 = pneg %p100
      %p281 = pneg %p124
      %p282 = pneg %p121
      %p283 = pneg %p145
      %p284 = pneg %p142
      %p285 = pneg %p166
      %p286 = pneg %p163
      %p287 = pneg %p187
      %p288 = pneg %p184
      %p289 = pneg %p213
      %p290 = pneg %p210
      %p291 = scmp.lt.s32.totalorder %s19, 1
      %s292 = scalar_select %p291, %s19, 1
      %s293 = smul.addr %s292, 8
      %s294 = smul.addr %s293, 8
      %s295 = scalar_lea.vmem %s8, %s294
      %p296 = scmp.lt.s32.totalorder %s19, 1
      %s297 = scalar_select %p296, %s19, 1
      %s298 = smul.addr %s297, 54
      %s299 = smul.addr %s298, 4
      %s300 = scalar_lea.vmem %s0, %s299
      %p301 = scmp.lt.s32.totalorder %s19, 1
      %s302 = scalar_select %p301, %s19, 1
      %s303 = smul.addr %s302, 8
      %s304 = smul.addr %s303, 8
      %s305 = scalar_lea.vmem %s8, %s304
      %v307 = vld [vmem:[%s300] sm:$0xf]
      %v308 = vld [vmem:[%s300 + $0x4] sm:$0xf]
      %v309 = vld [vmem:[%s300 + $0x8] sm:$0x1]
      %v310 = vld [vmem:[%s300 + $0xc] sm:$0xf]
      %v311 = vld [vmem:[%s300 + $0x10] sm:$0xf]
      %v312 = vld [vmem:[%s300 + $0x14] sm:$0x1]
      %v313 = vld [vmem:[%s300 + $0x18] sm:$0xf]
      %v314 = vld [vmem:[%s300 + $0x1c] sm:$0xf]
      %v315 = vld [vmem:[%s300 + $0x20] sm:$0x1]
      %v316 = vld [vmem:[%s300 + $0x24] sm:$0xf]
      %v317 = vld [vmem:[%s300 + $0x28] sm:$0xf]
      %v318 = vld [vmem:[%s300 + $0x2c] sm:$0x1]
      %v319 = vld [vmem:[%s300 + $0x30] sm:$0xf]
      %v320 = vld [vmem:[%s300 + $0x34] sm:$0xf]
      %v321 = vld [vmem:[%s300 + $0x38] sm:$0x1]
      %v322 = vld [vmem:[%s300 + $0x3c] sm:$0xf]
      %v323 = vld [vmem:[%s300 + $0x40] sm:$0xf]
      %v324 = vld [vmem:[%s300 + $0x44] sm:$0x1]
      %v325 = vld [vmem:[%s300 + $0x48] sm:$0xf]
      %v326 = vld [vmem:[%s300 + $0x4c] sm:$0xf]
      %v327 = vld [vmem:[%s300 + $0x50] sm:$0x1]
      %v328 = vld [vmem:[%s300 + $0x54] sm:$0xf]
      %v329 = vld [vmem:[%s300 + $0x58] sm:$0xf]
      %v330 = vld [vmem:[%s300 + $0x5c] sm:$0x1]
      %v331 = vld [vmem:[%s300 + $0x60] sm:$0xf]
      %v332 = vld [vmem:[%s300 + $0x64] sm:$0xf]
      %v333 = vld [vmem:[%s300 + $0x68] sm:$0x1]
      %v334 = vld [vmem:[%s300 + $0x6c] sm:$0xf]
      %v335 = vld [vmem:[%s300 + $0x70] sm:$0xf]
      %v336 = vld [vmem:[%s300 + $0x74] sm:$0x1]
      %v337 = vld [vmem:[%s300 + $0x78] sm:$0xf]
      %v338 = vld [vmem:[%s300 + $0x7c] sm:$0xf]
      %v339 = vld [vmem:[%s300 + $0x80] sm:$0x1]
      %v340 = vld [vmem:[%s300 + $0x84] sm:$0xf]
      %v341 = vld [vmem:[%s300 + $0x88] sm:$0xf]
      %v342 = vld [vmem:[%s300 + $0x8c] sm:$0x1]
      %v343 = vld [vmem:[%s300 + $0x90] sm:$0xf]
      %v344 = vld [vmem:[%s300 + $0x94] sm:$0xf]
      %v345 = vld [vmem:[%s300 + $0x98] sm:$0x1]
      %v346 = vld [vmem:[%s300 + $0x9c] sm:$0xf]
      %v347 = vld [vmem:[%s300 + $0xa0] sm:$0xf]
      %v348 = vld [vmem:[%s300 + $0xa4] sm:$0x1]
      %v349 = vld [vmem:[%s300 + $0xa8] sm:$0xf]
      %v350 = vld [vmem:[%s300 + $0xac] sm:$0xf]
      %v351 = vld [vmem:[%s300 + $0xb0] sm:$0x1]
      %v352 = vld [vmem:[%s300 + $0xb4] sm:$0xf]
      %v353 = vld [vmem:[%s300 + $0xb8] sm:$0xf]
      %v354 = vld [vmem:[%s300 + $0xbc] sm:$0x1]
      %v355 = vld [vmem:[%s300 + $0xc0] sm:$0xf]
      %v356 = vld [vmem:[%s300 + $0xc4] sm:$0xf]
      %v357 = vld [vmem:[%s300 + $0xc8] sm:$0x1]
      %v358 = vunpack.c.l.bf16 %v307
      %v359 = vunpack.c.l.bf16 %v308
      %v360 = vunpack.c.l.bf16 %v309
      %v361 = vunpack.c.l.bf16 %v310
      %v362 = vunpack.c.l.bf16 %v311
      %v363 = vunpack.c.l.bf16 %v312
      %v364 = vunpack.c.l.bf16 %v313
      %v365 = vunpack.c.l.bf16 %v314
      %v366 = vunpack.c.l.bf16 %v315
      %v367 = vunpack.c.l.bf16 %v316
      %v368 = vunpack.c.l.bf16 %v317
      %v369 = vunpack.c.l.bf16 %v318
      %v370 = vunpack.c.l.bf16 %v319
      %v371 = vunpack.c.l.bf16 %v320
      %v372 = vunpack.c.l.bf16 %v321
      %v373 = vunpack.c.l.bf16 %v322
      %v374 = vunpack.c.l.bf16 %v323
      %v375 = vunpack.c.l.bf16 %v324
      %v376 = vunpack.c.l.bf16 %v325
      %v377 = vunpack.c.l.bf16 %v326
      %v378 = vunpack.c.l.bf16 %v327
      %v379 = vunpack.c.l.bf16 %v328
      %v380 = vunpack.c.l.bf16 %v329
      %v381 = vunpack.c.l.bf16 %v330
      %v382 = vunpack.c.l.bf16 %v331
      %v383 = vunpack.c.l.bf16 %v332
      %v384 = vunpack.c.l.bf16 %v333
      %v385 = vunpack.c.l.bf16 %v334
      %v386 = vunpack.c.l.bf16 %v335
      %v387 = vunpack.c.l.bf16 %v336
      %v388 = vunpack.c.l.bf16 %v337
      %v389 = vunpack.c.l.bf16 %v338
      %v390 = vunpack.c.l.bf16 %v339
      %v391 = vunpack.c.l.bf16 %v340
      %v392 = vunpack.c.l.bf16 %v341
      %v393 = vunpack.c.l.bf16 %v342
      %v394 = vunpack.c.l.bf16 %v343
      %v395 = vunpack.c.l.bf16 %v344
      %v396 = vunpack.c.l.bf16 %v345
      %v397 = vunpack.c.l.bf16 %v346
      %v398 = vunpack.c.l.bf16 %v347
      %v399 = vunpack.c.l.bf16 %v348
      %v400 = vunpack.c.l.bf16 %v349
      %v401 = vunpack.c.l.bf16 %v350
      %v402 = vunpack.c.l.bf16 %v351
      %v403 = vunpack.c.l.bf16 %v352
      %v404 = vunpack.c.l.bf16 %v353
      %v405 = vunpack.c.l.bf16 %v354
      %v406 = vunpack.c.l.bf16 %v355
      %v407 = vunpack.c.l.bf16 %v356
      %v408 = vunpack.c.l.bf16 %v357
      %vm460 = vcmask 1046528
      %v461 = vrot.slane %v358, 1
      %v462 = vrot.slane %v359, 1
      %v463 = vsel %vm460, %v461, %v462
      %v464 = vrot.slane %v360, 1
      %v465 = vsel %vm460, %v462, %v464
      %v466 = vrot.slane %v361, 1
      %v467 = vrot.slane %v362, 1
      %v468 = vsel %vm460, %v466, %v467
      %v469 = vrot.slane %v363, 1
      %v470 = vsel %vm460, %v467, %v469
      %v471 = vrot.slane %v364, 1
      %v472 = vrot.slane %v365, 1
      %v473 = vsel %vm460, %v471, %v472
      %v474 = vrot.slane %v366, 1
      %v475 = vsel %vm460, %v472, %v474
      %v476 = vrot.slane %v367, 1
      %v477 = vrot.slane %v368, 1
      %v478 = vsel %vm460, %v476, %v477
      %v479 = vrot.slane %v369, 1
      %v480 = vsel %vm460, %v477, %v479
      %v481 = vrot.slane %v370, 1
      %v482 = vrot.slane %v371, 1
      %v483 = vsel %vm460, %v481, %v482
      %v484 = vrot.slane %v372, 1
      %v485 = vsel %vm460, %v482, %v484
      %v486 = vrot.slane %v373, 1
      %v487 = vrot.slane %v374, 1
      %v488 = vsel %vm460, %v486, %v487
      %v489 = vrot.slane %v375, 1
      %v490 = vsel %vm460, %v487, %v489
      %v491 = vrot.slane %v376, 1
      %v492 = vrot.slane %v377, 1
      %v493 = vsel %vm460, %v491, %v492
      %v494 = vrot.slane %v378, 1
      %v495 = vsel %vm460, %v492, %v494
      %v496 = vrot.slane %v379, 1
      %v497 = vrot.slane %v380, 1
      %v498 = vsel %vm460, %v496, %v497
      %v499 = vrot.slane %v381, 1
      %v500 = vsel %vm460, %v497, %v499
      %v501 = vrot.slane %v382, 1
      %v502 = vrot.slane %v383, 1
      %v503 = vsel %vm460, %v501, %v502
      %v504 = vrot.slane %v384, 1
      %v505 = vsel %vm460, %v502, %v504
      %v506 = vrot.slane %v385, 1
      %v507 = vrot.slane %v386, 1
      %v508 = vsel %vm460, %v506, %v507
      %v509 = vrot.slane %v387, 1
      %v510 = vsel %vm460, %v507, %v509
      %v511 = vrot.slane %v388, 1
      %v512 = vrot.slane %v389, 1
      %v513 = vsel %vm460, %v511, %v512
      %v514 = vrot.slane %v390, 1
      %v515 = vsel %vm460, %v512, %v514
      %v516 = vrot.slane %v391, 1
      %v517 = vrot.slane %v392, 1
      %v518 = vsel %vm460, %v516, %v517
      %v519 = vrot.slane %v393, 1
      %v520 = vsel %vm460, %v517, %v519
      %v521 = vrot.slane %v394, 1
      %v522 = vrot.slane %v395, 1
      %v523 = vsel %vm460, %v521, %v522
      %v524 = vrot.slane %v396, 1
      %v525 = vsel %vm460, %v522, %v524
      %v526 = vrot.slane %v397, 1
      %v527 = vrot.slane %v398, 1
      %v528 = vsel %vm460, %v526, %v527
      %v529 = vrot.slane %v399, 1
      %v530 = vsel %vm460, %v527, %v529
      %v531 = vrot.slane %v400, 1
      %v532 = vrot.slane %v401, 1
      %v533 = vsel %vm460, %v531, %v532
      %v534 = vrot.slane %v402, 1
      %v535 = vsel %vm460, %v532, %v534
      %v536 = vrot.slane %v403, 1
      %v537 = vrot.slane %v404, 1
      %v538 = vsel %vm460, %v536, %v537
      %v539 = vrot.slane %v405, 1
      %v540 = vsel %vm460, %v537, %v539
      %v541 = vrot.slane %v406, 1
      %v542 = vrot.slane %v407, 1
      %v543 = vsel %vm460, %v541, %v542
      %v544 = vrot.slane %v408, 1
      %v545 = vsel %vm460, %v542, %v544
      %546 = vrot.lane.b32.xlu0 %v463, 16
      %v547 = vpop.permute.xlu0 %546
      %548 = vrot.lane.b32.xlu0 %v465, 16
      %v549 = vpop.permute.xlu0 %548
      %550 = vrot.lane.b32.xlu0 %v468, 16
      %v551 = vpop.permute.xlu0 %550
      %552 = vrot.lane.b32.xlu0 %v470, 16
      %v553 = vpop.permute.xlu0 %552
      %554 = vrot.lane.b32.xlu0 %v473, 16
      %v555 = vpop.permute.xlu0 %554
      %556 = vrot.lane.b32.xlu0 %v475, 16
      %v557 = vpop.permute.xlu0 %556
      %558 = vrot.lane.b32.xlu0 %v478, 16
      %v559 = vpop.permute.xlu0 %558
      %560 = vrot.lane.b32.xlu0 %v480, 16
      %v561 = vpop.permute.xlu0 %560
      %562 = vrot.lane.b32.xlu0 %v483, 16
      %v563 = vpop.permute.xlu0 %562
      %564 = vrot.lane.b32.xlu0 %v485, 16
      %v565 = vpop.permute.xlu0 %564
      %566 = vrot.lane.b32.xlu0 %v488, 16
      %v567 = vpop.permute.xlu0 %566
      %568 = vrot.lane.b32.xlu0 %v490, 16
      %v569 = vpop.permute.xlu0 %568
      %570 = vrot.lane.b32.xlu0 %v493, 16
      %v571 = vpop.permute.xlu0 %570
      %572 = vrot.lane.b32.xlu0 %v495, 16
      %v573 = vpop.permute.xlu0 %572
      %574 = vrot.lane.b32.xlu0 %v498, 16
      %v575 = vpop.permute.xlu0 %574
      %576 = vrot.lane.b32.xlu0 %v500, 16
      %v577 = vpop.permute.xlu0 %576
      %578 = vrot.lane.b32.xlu0 %v503, 16
      %v579 = vpop.permute.xlu0 %578
      %580 = vrot.lane.b32.xlu0 %v505, 16
      %v581 = vpop.permute.xlu0 %580
      %582 = vrot.lane.b32.xlu0 %v508, 16
      %v583 = vpop.permute.xlu0 %582
      %584 = vrot.lane.b32.xlu0 %v510, 16
      %v585 = vpop.permute.xlu0 %584
      %586 = vrot.lane.b32.xlu0 %v513, 16
      %v587 = vpop.permute.xlu0 %586
      %588 = vrot.lane.b32.xlu0 %v515, 16
      %v589 = vpop.permute.xlu0 %588
      %590 = vrot.lane.b32.xlu0 %v518, 16
      %v591 = vpop.permute.xlu0 %590
      %592 = vrot.lane.b32.xlu0 %v520, 16
      %v593 = vpop.permute.xlu0 %592
      %594 = vrot.lane.b32.xlu0 %v523, 16
      %v595 = vpop.permute.xlu0 %594
      %596 = vrot.lane.b32.xlu0 %v525, 16
      %v597 = vpop.permute.xlu0 %596
      %598 = vrot.lane.b32.xlu0 %v528, 16
      %v599 = vpop.permute.xlu0 %598
      %600 = vrot.lane.b32.xlu0 %v530, 16
      %v601 = vpop.permute.xlu0 %600
      %602 = vrot.lane.b32.xlu0 %v533, 16
      %v603 = vpop.permute.xlu0 %602
      %604 = vrot.lane.b32.xlu0 %v535, 16
      %v605 = vpop.permute.xlu0 %604
      %606 = vrot.lane.b32.xlu0 %v538, 16
      %v607 = vpop.permute.xlu0 %606
      %608 = vrot.lane.b32.xlu0 %v540, 16
      %v609 = vpop.permute.xlu0 %608
      %610 = vrot.lane.b32.xlu0 %v543, 16
      %v611 = vpop.permute.xlu0 %610
      %612 = vrot.lane.b32.xlu0 %v545, 16
      %v613 = vpop.permute.xlu0 %612
      %vm648 = vcmask 1045504
      %v649 = vrot.slane %v358, 2
      %v650 = vrot.slane %v359, 2
      %v651 = vsel %vm648, %v649, %v650
      %v652 = vrot.slane %v360, 2
      %v653 = vsel %vm648, %v650, %v652
      %v654 = vrot.slane %v361, 2
      %v655 = vrot.slane %v362, 2
      %v656 = vsel %vm648, %v654, %v655
      %v657 = vrot.slane %v363, 2
      %v658 = vsel %vm648, %v655, %v657
      %v659 = vrot.slane %v364, 2
      %v660 = vrot.slane %v365, 2
      %v661 = vsel %vm648, %v659, %v660
      %v662 = vrot.slane %v366, 2
      %v663 = vsel %vm648, %v660, %v662
      %v664 = vrot.slane %v367, 2
      %v665 = vrot.slane %v368, 2
      %v666 = vsel %vm648, %v664, %v665
      %v667 = vrot.slane %v369, 2
      %v668 = vsel %vm648, %v665, %v667
      %v669 = vrot.slane %v370, 2
      %v670 = vrot.slane %v371, 2
      %v671 = vsel %vm648, %v669, %v670
      %v672 = vrot.slane %v372, 2
      %v673 = vsel %vm648, %v670, %v672
      %v674 = vrot.slane %v373, 2
      %v675 = vrot.slane %v374, 2
      %v676 = vsel %vm648, %v674, %v675
      %v677 = vrot.slane %v375, 2
      %v678 = vsel %vm648, %v675, %v677
      %v679 = vrot.slane %v376, 2
      %v680 = vrot.slane %v377, 2
      %v681 = vsel %vm648, %v679, %v680
      %v682 = vrot.slane %v378, 2
      %v683 = vsel %vm648, %v680, %v682
      %v684 = vrot.slane %v379, 2
      %v685 = vrot.slane %v380, 2
      %v686 = vsel %vm648, %v684, %v685
      %v687 = vrot.slane %v381, 2
      %v688 = vsel %vm648, %v685, %v687
      %v689 = vrot.slane %v382, 2
      %v690 = vrot.slane %v383, 2
      %v691 = vsel %vm648, %v689, %v690
      %v692 = vrot.slane %v384, 2
      %v693 = vsel %vm648, %v690, %v692
      %v694 = vrot.slane %v385, 2
      %v695 = vrot.slane %v386, 2
      %v696 = vsel %vm648, %v694, %v695
      %v697 = vrot.slane %v387, 2
      %v698 = vsel %vm648, %v695, %v697
      %v699 = vrot.slane %v388, 2
      %v700 = vrot.slane %v389, 2
      %v701 = vsel %vm648, %v699, %v700
      %v702 = vrot.slane %v390, 2
      %v703 = vsel %vm648, %v700, %v702
      %v704 = vrot.slane %v391, 2
      %v705 = vrot.slane %v392, 2
      %v706 = vsel %vm648, %v704, %v705
      %v707 = vrot.slane %v393, 2
      %v708 = vsel %vm648, %v705, %v707
      %v709 = vrot.slane %v394, 2
      %v710 = vrot.slane %v395, 2
      %v711 = vsel %vm648, %v709, %v710
      %v712 = vrot.slane %v396, 2
      %v713 = vsel %vm648, %v710, %v712
      %v714 = vrot.slane %v397, 2
      %v715 = vrot.slane %v398, 2
      %v716 = vsel %vm648, %v714, %v715
      %v717 = vrot.slane %v399, 2
      %v718 = vsel %vm648, %v715, %v717
      %v719 = vrot.slane %v400, 2
      %v720 = vrot.slane %v401, 2
      %v721 = vsel %vm648, %v719, %v720
      %v722 = vrot.slane %v402, 2
      %v723 = vsel %vm648, %v720, %v722
      %v724 = vrot.slane %v403, 2
      %v725 = vrot.slane %v404, 2
      %v726 = vsel %vm648, %v724, %v725
      %v727 = vrot.slane %v405, 2
      %v728 = vsel %vm648, %v725, %v727
      %v729 = vrot.slane %v406, 2
      %v730 = vrot.slane %v407, 2
      %v731 = vsel %vm648, %v729, %v730
      %v732 = vrot.slane %v408, 2
      %v733 = vsel %vm648, %v730, %v732
      %734 = vrot.lane.b32.xlu0 %v651, 32
      %v735 = vpop.permute.xlu0 %734
      %736 = vrot.lane.b32.xlu0 %v653, 32
      %v737 = vpop.permute.xlu0 %736
      %738 = vrot.lane.b32.xlu0 %v656, 32
      %v739 = vpop.permute.xlu0 %738
      %740 = vrot.lane.b32.xlu0 %v658, 32
      %v741 = vpop.permute.xlu0 %740
      %742 = vrot.lane.b32.xlu0 %v661, 32
      %v743 = vpop.permute.xlu0 %742
      %744 = vrot.lane.b32.xlu0 %v663, 32
      %v745 = vpop.permute.xlu0 %744
      %746 = vrot.lane.b32.xlu0 %v666, 32
      %v747 = vpop.permute.xlu0 %746
      %748 = vrot.lane.b32.xlu0 %v668, 32
      %v749 = vpop.permute.xlu0 %748
      %750 = vrot.lane.b32.xlu0 %v671, 32
      %v751 = vpop.permute.xlu0 %750
      %752 = vrot.lane.b32.xlu0 %v673, 32
      %v753 = vpop.permute.xlu0 %752
      %754 = vrot.lane.b32.xlu0 %v676, 32
      %v755 = vpop.permute.xlu0 %754
      %756 = vrot.lane.b32.xlu0 %v678, 32
      %v757 = vpop.permute.xlu0 %756
      %758 = vrot.lane.b32.xlu0 %v681, 32
      %v759 = vpop.permute.xlu0 %758
      %760 = vrot.lane.b32.xlu0 %v683, 32
      %v761 = vpop.permute.xlu0 %760
      %762 = vrot.lane.b32.xlu0 %v686, 32
      %v763 = vpop.permute.xlu0 %762
      %764 = vrot.lane.b32.xlu0 %v688, 32
      %v765 = vpop.permute.xlu0 %764
      %766 = vrot.lane.b32.xlu0 %v691, 32
      %v767 = vpop.permute.xlu0 %766
      %768 = vrot.lane.b32.xlu0 %v693, 32
      %v769 = vpop.permute.xlu0 %768
      %770 = vrot.lane.b32.xlu0 %v696, 32
      %v771 = vpop.permute.xlu0 %770
      %772 = vrot.lane.b32.xlu0 %v698, 32
      %v773 = vpop.permute.xlu0 %772
      %774 = vrot.lane.b32.xlu0 %v701, 32
      %v775 = vpop.permute.xlu0 %774
      %776 = vrot.lane.b32.xlu0 %v703, 32
      %v777 = vpop.permute.xlu0 %776
      %778 = vrot.lane.b32.xlu0 %v706, 32
      %v779 = vpop.permute.xlu0 %778
      %780 = vrot.lane.b32.xlu0 %v708, 32
      %v781 = vpop.permute.xlu0 %780
      %782 = vrot.lane.b32.xlu0 %v711, 32
      %v783 = vpop.permute.xlu0 %782
      %784 = vrot.lane.b32.xlu0 %v713, 32
      %v785 = vpop.permute.xlu0 %784
      %786 = vrot.lane.b32.xlu0 %v716, 32
      %v787 = vpop.permute.xlu0 %786
      %788 = vrot.lane.b32.xlu0 %v718, 32
      %v789 = vpop.permute.xlu0 %788
      %790 = vrot.lane.b32.xlu0 %v721, 32
      %v791 = vpop.permute.xlu0 %790
      %792 = vrot.lane.b32.xlu0 %v723, 32
      %v793 = vpop.permute.xlu0 %792
      %794 = vrot.lane.b32.xlu0 %v726, 32
      %v795 = vpop.permute.xlu0 %794
      %796 = vrot.lane.b32.xlu0 %v728, 32
      %v797 = vpop.permute.xlu0 %796
      %798 = vrot.lane.b32.xlu0 %v731, 32
      %v799 = vpop.permute.xlu0 %798
      %800 = vrot.lane.b32.xlu0 %v733, 32
      %v801 = vpop.permute.xlu0 %800
      %vm836 = vcmask 130048
      %v837 = vsel %vm836, %v358, %v547
      %v838 = vsel %vm836, %v359, %v549
      %v839 = vsel %vm836, %v361, %v551
      %v840 = vsel %vm836, %v362, %v553
      %v841 = vsel %vm836, %v364, %v555
      %v842 = vsel %vm836, %v365, %v557
      %v843 = vsel %vm836, %v367, %v559
      %v844 = vsel %vm836, %v368, %v561
      %v845 = vsel %vm836, %v370, %v563
      %v846 = vsel %vm836, %v371, %v565
      %v847 = vsel %vm836, %v373, %v567
      %v848 = vsel %vm836, %v374, %v569
      %v849 = vsel %vm836, %v376, %v571
      %v850 = vsel %vm836, %v377, %v573
      %v851 = vsel %vm836, %v379, %v575
      %v852 = vsel %vm836, %v380, %v577
      %v853 = vsel %vm836, %v382, %v579
      %v854 = vsel %vm836, %v383, %v581
      %v855 = vsel %vm836, %v385, %v583
      %v856 = vsel %vm836, %v386, %v585
      %v857 = vsel %vm836, %v388, %v587
      %v858 = vsel %vm836, %v389, %v589
      %v859 = vsel %vm836, %v391, %v591
      %v860 = vsel %vm836, %v392, %v593
      %v861 = vsel %vm836, %v394, %v595
      %v862 = vsel %vm836, %v395, %v597
      %v863 = vsel %vm836, %v397, %v599
      %v864 = vsel %vm836, %v398, %v601
      %v865 = vsel %vm836, %v400, %v603
      %v866 = vsel %vm836, %v401, %v605
      %v867 = vsel %vm836, %v403, %v607
      %v868 = vsel %vm836, %v404, %v609
      %v869 = vsel %vm836, %v406, %v611
      %v870 = vsel %vm836, %v407, %v613
      %vm871 = vcmask 261120
      %v872 = vsel %vm871, %v837, %v735
      %v873 = vsel %vm871, %v838, %v737
      %v874 = vsel %vm871, %v839, %v739
      %v875 = vsel %vm871, %v840, %v741
      %v876 = vsel %vm871, %v841, %v743
      %v877 = vsel %vm871, %v842, %v745
      %v878 = vsel %vm871, %v843, %v747
      %v879 = vsel %vm871, %v844, %v749
      %v880 = vsel %vm871, %v845, %v751
      %v881 = vsel %vm871, %v846, %v753
      %v882 = vsel %vm871, %v847, %v755
      %v883 = vsel %vm871, %v848, %v757
      %v884 = vsel %vm871, %v849, %v759
      %v885 = vsel %vm871, %v850, %v761
      %v886 = vsel %vm871, %v851, %v763
      %v887 = vsel %vm871, %v852, %v765
      %v888 = vsel %vm871, %v853, %v767
      %v889 = vsel %vm871, %v854, %v769
      %v890 = vsel %vm871, %v855, %v771
      %v891 = vsel %vm871, %v856, %v773
      %v892 = vsel %vm871, %v857, %v775
      %v893 = vsel %vm871, %v858, %v777
      %v894 = vsel %vm871, %v859, %v779
      %v895 = vsel %vm871, %v860, %v781
      %v896 = vsel %vm871, %v861, %v783
      %v897 = vsel %vm871, %v862, %v785
      %v898 = vsel %vm871, %v863, %v787
      %v899 = vsel %vm871, %v864, %v789
      %v900 = vsel %vm871, %v865, %v791
      %v901 = vsel %vm871, %v866, %v793
      %v902 = vsel %vm871, %v867, %v795
      %v903 = vsel %vm871, %v868, %v797
      %v904 = vsel %vm871, %v869, %v799
      %v905 = vsel %vm871, %v870, %v801
      %v906 = vld [vmem:[%s1] sm:$0xf]
      %v907 = vld [vmem:[%s1 + $0x4] sm:$0xf]
      %v908 = vld [vmem:[%s1 + $0x8] sm:$0xf]
      %v909 = vld [vmem:[%s1 + $0xc] sm:$0xf]
      %v910 = vld [vmem:[%s1 + $0x10] sm:$0xf]
      %v911 = vld [vmem:[%s1 + $0x14] sm:$0xf]
      %v912 = vpack.c.bf16 %v873, %v872
      %v913 = vpack.c.bf16 %v877, %v876
      %v914 = vpack.c.bf16 %v881, %v880
      %v915 = vpack.c.bf16 %v885, %v884
      %v916 = vpack.c.bf16 %v889, %v888
      %v917 = vpack.c.bf16 %v893, %v892
      %v918 = vpack.c.bf16 %v897, %v896
      %v919 = vpack.c.bf16 %v901, %v900
      %s920 = scalar_lea.vmem %s1, 24
      %v921 = vld [vmem:[%s920] sm:$0xf]
      %v922 = vld [vmem:[%s920 + $0x4] sm:$0xf]
      %v923 = vld [vmem:[%s920 + $0x8] sm:$0xf]
      %v924 = vld [vmem:[%s920 + $0xc] sm:$0xf]
      %v925 = vld [vmem:[%s920 + $0x10] sm:$0xf]
      %v926 = vld [vmem:[%s920 + $0x14] sm:$0xf]
      %v927 = vpack.c.bf16 %v875, %v874
      %v928 = vpack.c.bf16 %v879, %v878
      %v929 = vpack.c.bf16 %v883, %v882
      %v930 = vpack.c.bf16 %v887, %v886
      %v931 = vpack.c.bf16 %v891, %v890
      %v932 = vpack.c.bf16 %v895, %v894
      %v933 = vpack.c.bf16 %v899, %v898
      %v934 = vpack.c.bf16 %v903, %v902
      %v941 = vunpack.c.l.b16 %v921
      %v942 = vunpack.c.l.b16 %v922
      %v943 = vunpack.c.l.b16 %v923
      %v944 = vunpack.c.l.b16 %v924
      %v945 = vunpack.c.l.b16 %v925
      %v946 = vunpack.c.l.b16 %v926
      %v947 = vpack.c.b16 %v942, %v941
      %v948 = vpack.c.b16 %v944, %v943
      %v949 = vpack.c.b16 %v946, %v945
      %vm953 = vcmask 392192
      %v955 = vsel %vm953, %v927, 0
      %v958 = vsel %vm953, %v928, 0
      %v961 = vsel %vm953, %v929, 0
      %v964 = vsel %vm953, %v930, 0
      %v967 = vsel %vm953, %v931, 0
      %v970 = vsel %vm953, %v932, 0
      %v973 = vsel %vm953, %v933, 0
      %v976 = vsel %vm953, %v934, 0
      %978 = vmatprep.subr.bf16.mxu0 0
      %979 = vmatpush1.bf16.msra.mxu0 %v947
      %980 = vmatprep.subr.bf16.mxu0 0
      %981 = vmatpush1.bf16.msra.mxu0 %v948
      %982 = vmatprep.subr.bf16.mxu0 0
      %983 = vmatpush1.bf16.msra.mxu0 %v949
      %984 = vmatprep.subr.bf16.mxu0 0
      %985 = vmatpush1.bf16.msra.mxu0 0
      %986 = vmatprep.subr.bf16.mxu0 0
      %987 = vmatpush1.bf16.msra.mxu0 0
      %988 = vmatprep.subr.bf16.mxu0 0
      %989 = vmatpush1.bf16.msra.mxu0 0
      %990 = vmatprep.subr.bf16.mxu0 0
      %991 = vmatpush1.bf16.msra.mxu0 0
      %992 = vmatprep.subr.bf16.mxu0 0
      %993 = vmatpush1.bf16.msra.mxu0 0
      %994 = vmatprep.subr.bf16.mxu0 0
      %995 = vmatpush1.bf16.msra.mxu0 0
      %996 = vmatprep.subr.bf16.mxu0 0
      %997 = vmatpush1.bf16.msra.mxu0 0
      %998 = vmatprep.subr.bf16.mxu0 0
      %999 = vmatpush1.bf16.msra.mxu0 0
      %1000 = vmatprep.subr.bf16.mxu0 0
      %1001 = vmatpush1.bf16.msra.mxu0 0
      %1002 = vmatprep.subr.bf16.mxu0 0
      %1003 = vmatpush1.bf16.msra.mxu0 0
      %1004 = vmatprep.subr.bf16.mxu0 0
      %1005 = vmatpush1.bf16.msra.mxu0 0
      %1006 = vmatprep.subr.bf16.mxu0 0
      %1007 = vmatpush1.bf16.msra.mxu0 0
      %1008 = vmatprep.subr.bf16.mxu0 0
      %1009 = vmatpush1.bf16.msra.mxu0 0
      %1010 = vmatprep.mubr.bf16.mxu0 0
      %1011 = vmatmul.mubr.bf16.gmra.mrb[0].mxu0 %v955
      %v1012 = vpop.f32.mrb[0].mxu0
      %v1013 = vadd.f32 0.0, %v1012
      %v1014 = vpop.f32.mrb[0].mxu0
      %v1015 = vpop.f32.mrb[0].mxu0
      %v1016 = vadd.f32 0.0, %v1015
      %v1017 = vpop.f32.mrb[0].mxu0
      %1018 = vmatprep.mubr.bf16.mxu0 0
      %1019 = vmatmul.mubr.bf16.gmra.mrb[0].mxu0 %v958
      %v1020 = vpop.f32.mrb[0].mxu0
      %v1021 = vadd.f32 0.0, %v1020
      %v1022 = vpop.f32.mrb[0].mxu0
      %v1023 = vpop.f32.mrb[0].mxu0
      %v1024 = vadd.f32 0.0, %v1023
      %v1025 = vpop.f32.mrb[0].mxu0
      %1026 = vmatprep.mubr.bf16.mxu0 0
      %1027 = vmatmul.mubr.bf16.gmra.mrb[0].mxu0 %v961
      %v1028 = vpop.f32.mrb[0].mxu0
      %v1029 = vadd.f32 0.0, %v1028
      %v1030 = vpop.f32.mrb[0].mxu0
      %v1031 = vpop.f32.mrb[0].mxu0
      %v1032 = vadd.f32 0.0, %v1031
      %v1033 = vpop.f32.mrb[0].mxu0
      %1034 = vmatprep.mubr.bf16.mxu0 0
      %1035 = vmatmul.mubr.bf16.gmra.mrb[0].mxu0 %v964
      %v1036 = vpop.f32.mrb[0].mxu0
      %v1037 = vadd.f32 0.0, %v1036
      %v1038 = vpop.f32.mrb[0].mxu0
      %v1039 = vpop.f32.mrb[0].mxu0
      %v1040 = vadd.f32 0.0, %v1039
      %v1041 = vpop.f32.mrb[0].mxu0
      %1042 = vmatprep.mubr.bf16.mxu0 0
      %1043 = vmatmul.mubr.bf16.gmra.mrb[0].mxu0 %v967
      %v1044 = vpop.f32.mrb[0].mxu0
      %v1045 = vadd.f32 0.0, %v1044
      %v1046 = vpop.f32.mrb[0].mxu0
      %v1047 = vpop.f32.mrb[0].mxu0
      %v1048 = vadd.f32 0.0, %v1047
      %v1049 = vpop.f32.mrb[0].mxu0
      %1050 = vmatprep.mubr.bf16.mxu0 0
      %1051 = vmatmul.mubr.bf16.gmra.mrb[0].mxu0 %v970
      %v1052 = vpop.f32.mrb[0].mxu0
      %v1053 = vadd.f32 0.0, %v1052
      %v1054 = vpop.f32.mrb[0].mxu0
      %v1055 = vpop.f32.mrb[0].mxu0
      %v1056 = vadd.f32 0.0, %v1055
      %v1057 = vpop.f32.mrb[0].mxu0
      %1058 = vmatprep.mubr.bf16.mxu0 0
      %1059 = vmatmul.mubr.bf16.gmra.mrb[0].mxu0 %v973
      %v1060 = vpop.f32.mrb[0].mxu0
      %v1061 = vadd.f32 0.0, %v1060
      %v1062 = vpop.f32.mrb[0].mxu0
      %v1063 = vpop.f32.mrb[0].mxu0
      %v1064 = vadd.f32 0.0, %v1063
      %v1065 = vpop.f32.mrb[0].mxu0
      %1066 = vmatprep.mubr.bf16.mxu0 0
      %1067 = vmatmul.mubr.bf16.gmra.mrb[0].mxu0 %v976
      %v1068 = vpop.f32.mrb[0].mxu0
      %v1069 = vadd.f32 0.0, %v1068
      %v1070 = vpop.f32.mrb[0].mxu0
      %v1071 = vpop.f32.mrb[0].mxu0
      %v1072 = vadd.f32 0.0, %v1071
      %v1073 = vpop.f32.mrb[0].mxu0
      %1074 = vdwg.mxu0
      %v1081 = vunpack.c.l.b16 %v906
      %v1082 = vunpack.c.l.b16 %v907
      %v1083 = vunpack.c.l.b16 %v908
      %v1084 = vunpack.c.l.b16 %v909
      %v1085 = vunpack.c.l.b16 %v910
      %v1086 = vunpack.c.l.b16 %v911
      %v1087 = vpack.c.b16 %v1082, %v1081
      %v1088 = vpack.c.b16 %v1084, %v1083
      %v1089 = vpack.c.b16 %v1086, %v1085
      %v1094 = vsel %vm953, %v912, 0
      %v1097 = vsel %vm953, %v913, 0
      %v1100 = vsel %vm953, %v914, 0
      %v1103 = vsel %vm953, %v915, 0
      %v1106 = vsel %vm953, %v916, 0
      %v1109 = vsel %vm953, %v917, 0
      %v1112 = vsel %vm953, %v918, 0
      %v1115 = vsel %vm953, %v919, 0
      %1117 = vmatprep.subr.bf16.mxu0 0
      %1118 = vmatpush1.bf16.msra.mxu0 %v1087
      %1119 = vmatprep.subr.bf16.mxu0 0
      %1120 = vmatpush1.bf16.msra.mxu0 %v1088
      %1121 = vmatprep.subr.bf16.mxu0 0
      %1122 = vmatpush1.bf16.msra.mxu0 %v1089
      %1123 = vmatprep.subr.bf16.mxu0 0
      %1124 = vmatpush1.bf16.msra.mxu0 0
      %1125 = vmatprep.subr.bf16.mxu0 0
      %1126 = vmatpush1.bf16.msra.mxu0 0
      %1127 = vmatprep.subr.bf16.mxu0 0
      %1128 = vmatpush1.bf16.msra.mxu0 0
      %1129 = vmatprep.subr.bf16.mxu0 0
      %1130 = vmatpush1.bf16.msra.mxu0 0
      %1131 = vmatprep.subr.bf16.mxu0 0
      %1132 = vmatpush1.bf16.msra.mxu0 0
      %1133 = vmatprep.subr.bf16.mxu0 0
      %1134 = vmatpush1.bf16.msra.mxu0 0
      %1135 = vmatprep.subr.bf16.mxu0 0
      %1136 = vmatpush1.bf16.msra.mxu0 0
      %1137 = vmatprep.subr.bf16.mxu0 0
      %1138 = vmatpush1.bf16.msra.mxu0 0
      %1139 = vmatprep.subr.bf16.mxu0 0
      %1140 = vmatpush1.bf16.msra.mxu0 0
      %1141 = vmatprep.subr.bf16.mxu0 0
      %1142 = vmatpush1.bf16.msra.mxu0 0
      %1143 = vmatprep.subr.bf16.mxu0 0
      %1144 = vmatpush1.bf16.msra.mxu0 0
      %1145 = vmatprep.subr.bf16.mxu0 0
      %1146 = vmatpush1.bf16.msra.mxu0 0
      %1147 = vmatprep.subr.bf16.mxu0 0
      %1148 = vmatpush1.bf16.msra.mxu0 0
      %1149 = vmatprep.mubr.bf16.mxu0 0
      %1150 = vmatmul.mubr.bf16.gmra.mrb[0].mxu0 %v1094
      %v1151 = vpop.f32.mrb[0].mxu0
      %v1152 = vadd.f32 %v1013, %v1151
      %v1153 = vpop.f32.mrb[0].mxu0
      %v1154 = vpop.f32.mrb[0].mxu0
      %v1155 = vadd.f32 %v1016, %v1154
      %v1156 = vpop.f32.mrb[0].mxu0
      %1157 = vmatprep.mubr.bf16.mxu0 0
      %1158 = vmatmul.mubr.bf16.gmra.mrb[0].mxu0 %v1097
      %v1159 = vpop.f32.mrb[0].mxu0
      %v1160 = vadd.f32 %v1021, %v1159
      %v1161 = vpop.f32.mrb[0].mxu0
      %v1162 = vpop.f32.mrb[0].mxu0
      %v1163 = vadd.f32 %v1024, %v1162
      %v1164 = vpop.f32.mrb[0].mxu0
      %1165 = vmatprep.mubr.bf16.mxu0 0
      %1166 = vmatmul.mubr.bf16.gmra.mrb[0].mxu0 %v1100
      %v1167 = vpop.f32.mrb[0].mxu0
      %v1168 = vadd.f32 %v1029, %v1167
      %v1169 = vpop.f32.mrb[0].mxu0
      %v1170 = vpop.f32.mrb[0].mxu0
      %v1171 = vadd.f32 %v1032, %v1170
      %v1172 = vpop.f32.mrb[0].mxu0
      %1173 = vmatprep.mubr.bf16.mxu0 0
      %1174 = vmatmul.mubr.bf16.gmra.mrb[0].mxu0 %v1103
      %v1175 = vpop.f32.mrb[0].mxu0
      %v1176 = vadd.f32 %v1037, %v1175
      %v1177 = vpop.f32.mrb[0].mxu0
      %v1178 = vpop.f32.mrb[0].mxu0
      %v1179 = vadd.f32 %v1040, %v1178
      %v1180 = vpop.f32.mrb[0].mxu0
      %1181 = vmatprep.mubr.bf16.mxu0 0
      %1182 = vmatmul.mubr.bf16.gmra.mrb[0].mxu0 %v1106
      %v1183 = vpop.f32.mrb[0].mxu0
      %v1184 = vadd.f32 %v1045, %v1183
      %v1185 = vpop.f32.mrb[0].mxu0
      %v1186 = vpop.f32.mrb[0].mxu0
      %v1187 = vadd.f32 %v1048, %v1186
      %v1188 = vpop.f32.mrb[0].mxu0
      %1189 = vmatprep.mubr.bf16.mxu0 0
      %1190 = vmatmul.mubr.bf16.gmra.mrb[0].mxu0 %v1109
      %v1191 = vpop.f32.mrb[0].mxu0
      %v1192 = vadd.f32 %v1053, %v1191
      %v1193 = vpop.f32.mrb[0].mxu0
      %v1194 = vpop.f32.mrb[0].mxu0
      %v1195 = vadd.f32 %v1056, %v1194
      %v1196 = vpop.f32.mrb[0].mxu0
      %1197 = vmatprep.mubr.bf16.mxu0 0
      %1198 = vmatmul.mubr.bf16.gmra.mrb[0].mxu0 %v1112
      %v1199 = vpop.f32.mrb[0].mxu0
      %v1200 = vadd.f32 %v1061, %v1199
      %v1201 = vpop.f32.mrb[0].mxu0
      %v1202 = vpop.f32.mrb[0].mxu0
      %v1203 = vadd.f32 %v1064, %v1202
      %v1204 = vpop.f32.mrb[0].mxu0
      %1205 = vmatprep.mubr.bf16.mxu0 0
      %1206 = vmatmul.mubr.bf16.gmra.mrb[0].mxu0 %v1115
      %v1207 = vpop.f32.mrb[0].mxu0
      %v1208 = vadd.f32 %v1069, %v1207
      %v1209 = vpop.f32.mrb[0].mxu0
      %v1210 = vpop.f32.mrb[0].mxu0
      %v1211 = vadd.f32 %v1072, %v1210
      %v1212 = vpop.f32.mrb[0].mxu0
      %1213 = vdwg.mxu0
      %s1214 = scalar_lea.vmem %s1, 48
      %v1215 = vld [vmem:[%s1214] sm:$0xf]
      %v1216 = vld [vmem:[%s1214 + $0x4] sm:$0xf]
      %v1217 = vld [vmem:[%s1214 + $0x8] sm:$0xf]
      %v1218 = vld [vmem:[%s1214 + $0xc] sm:$0xf]
      %v1219 = vld [vmem:[%s1214 + $0x10] sm:$0xf]
      %v1220 = vld [vmem:[%s1214 + $0x14] sm:$0xf]
      %v1221 = vpack.c.bf16 %v905, %v904
      %v1228 = vunpack.c.l.b16 %v1215
      %v1229 = vunpack.c.l.b16 %v1216
      %v1230 = vunpack.c.l.b16 %v1217
      %v1231 = vunpack.c.l.b16 %v1218
      %v1232 = vunpack.c.l.b16 %v1219
      %v1233 = vunpack.c.l.b16 %v1220
      %v1234 = vpack.c.b16 %v1229, %v1228
      %v1235 = vpack.c.b16 %v1231, %v1230
      %v1236 = vpack.c.b16 %v1233, %v1232
      %v1241 = vsel %vm953, %v1221, 0
      %1243 = vmatprep.subr.bf16.mxu0 0
      %1244 = vmatpush1.bf16.msra.mxu0 %v1234
      %1245 = vmatprep.subr.bf16.mxu0 0
      %1246 = vmatpush1.bf16.msra.mxu0 %v1235
      %1247 = vmatprep.subr.bf16.mxu0 0
      %1248 = vmatpush1.bf16.msra.mxu0 %v1236
      %1249 = vmatprep.subr.bf16.mxu0 0
      %1250 = vmatpush1.bf16.msra.mxu0 0
      %1251 = vmatprep.subr.bf16.mxu0 0
      %1252 = vmatpush1.bf16.msra.mxu0 0
      %1253 = vmatprep.subr.bf16.mxu0 0
      %1254 = vmatpush1.bf16.msra.mxu0 0
      %1255 = vmatprep.subr.bf16.mxu0 0
      %1256 = vmatpush1.bf16.msra.mxu0 0
      %1257 = vmatprep.subr.bf16.mxu0 0
      %1258 = vmatpush1.bf16.msra.mxu0 0
      %1259 = vmatprep.subr.bf16.mxu0 0
      %1260 = vmatpush1.bf16.msra.mxu0 0
      %1261 = vmatprep.subr.bf16.mxu0 0
      %1262 = vmatpush1.bf16.msra.mxu0 0
      %1263 = vmatprep.subr.bf16.mxu0 0
      %1264 = vmatpush1.bf16.msra.mxu0 0
      %1265 = vmatprep.subr.bf16.mxu0 0
      %1266 = vmatpush1.bf16.msra.mxu0 0
      %1267 = vmatprep.subr.bf16.mxu0 0
      %1268 = vmatpush1.bf16.msra.mxu0 0
      %1269 = vmatprep.subr.bf16.mxu0 0
      %1270 = vmatpush1.bf16.msra.mxu0 0
      %1271 = vmatprep.subr.bf16.mxu0 0
      %1272 = vmatpush1.bf16.msra.mxu0 0
      %1273 = vmatprep.subr.bf16.mxu0 0
      %1274 = vmatpush1.bf16.msra.mxu0 0
      %1275 = vmatprep.mubr.bf16.mxu0 0
      %1276 = vmatmul.mubr.bf16.gmra.mrb[0].mxu0 %v1097
      %v1277 = vpop.f32.mrb[0].mxu0
      %v1278 = vadd.f32 0.0, %v1277
      %v1279 = vpop.f32.mrb[0].mxu0
      %v1280 = vpop.f32.mrb[0].mxu0
      %v1281 = vadd.f32 0.0, %v1280
      %v1282 = vpop.f32.mrb[0].mxu0
      %1283 = vmatprep.mubr.bf16.mxu0 0
      %1284 = vmatmul.mubr.bf16.gmra.mrb[0].mxu0 %v1100
      %v1285 = vpop.f32.mrb[0].mxu0
      %v1286 = vadd.f32 0.0, %v1285
      %v1287 = vpop.f32.mrb[0].mxu0
      %v1288 = vpop.f32.mrb[0].mxu0
      %v1289 = vadd.f32 0.0, %v1288
      %v1290 = vpop.f32.mrb[0].mxu0
      %1291 = vmatprep.mubr.bf16.mxu0 0
      %1292 = vmatmul.mubr.bf16.gmra.mrb[0].mxu0 %v1103
      %v1293 = vpop.f32.mrb[0].mxu0
      %v1294 = vadd.f32 0.0, %v1293
      %v1295 = vpop.f32.mrb[0].mxu0
      %v1296 = vpop.f32.mrb[0].mxu0
      %v1297 = vadd.f32 0.0, %v1296
      %v1298 = vpop.f32.mrb[0].mxu0
      %1299 = vmatprep.mubr.bf16.mxu0 0
      %1300 = vmatmul.mubr.bf16.gmra.mrb[0].mxu0 %v1106
      %v1301 = vpop.f32.mrb[0].mxu0
      %v1302 = vadd.f32 0.0, %v1301
      %v1303 = vpop.f32.mrb[0].mxu0
      %v1304 = vpop.f32.mrb[0].mxu0
      %v1305 = vadd.f32 0.0, %v1304
      %v1306 = vpop.f32.mrb[0].mxu0
      %1307 = vmatprep.mubr.bf16.mxu0 0
      %1308 = vmatmul.mubr.bf16.gmra.mrb[0].mxu0 %v1109
      %v1309 = vpop.f32.mrb[0].mxu0
      %v1310 = vadd.f32 0.0, %v1309
      %v1311 = vpop.f32.mrb[0].mxu0
      %v1312 = vpop.f32.mrb[0].mxu0
      %v1313 = vadd.f32 0.0, %v1312
      %v1314 = vpop.f32.mrb[0].mxu0
      %1315 = vmatprep.mubr.bf16.mxu0 0
      %1316 = vmatmul.mubr.bf16.gmra.mrb[0].mxu0 %v1112
      %v1317 = vpop.f32.mrb[0].mxu0
      %v1318 = vadd.f32 0.0, %v1317
      %v1319 = vpop.f32.mrb[0].mxu0
      %v1320 = vpop.f32.mrb[0].mxu0
      %v1321 = vadd.f32 0.0, %v1320
      %v1322 = vpop.f32.mrb[0].mxu0
      %1323 = vmatprep.mubr.bf16.mxu0 0
      %1324 = vmatmul.mubr.bf16.gmra.mrb[0].mxu0 %v1115
      %v1325 = vpop.f32.mrb[0].mxu0
      %v1326 = vadd.f32 0.0, %v1325
      %v1327 = vpop.f32.mrb[0].mxu0
      %v1328 = vpop.f32.mrb[0].mxu0
      %v1329 = vadd.f32 0.0, %v1328
      %v1330 = vpop.f32.mrb[0].mxu0
      %1331 = vmatprep.mubr.bf16.mxu0 0
      %1332 = vmatmul.mubr.bf16.gmra.mrb[0].mxu0 %v1241
      %v1333 = vpop.f32.mrb[0].mxu0
      %v1334 = vadd.f32 0.0, %v1333
      %v1335 = vpop.f32.mrb[0].mxu0
      %v1336 = vpop.f32.mrb[0].mxu0
      %v1337 = vadd.f32 0.0, %v1336
      %v1338 = vpop.f32.mrb[0].mxu0
      %1339 = vdwg.mxu0
      %v1340 = vadd.f32 %v1152, %v1278
      %v1341 = vadd.f32 %v1155, %v1281
      %v1342 = vadd.f32 %v1160, %v1286
      %v1343 = vadd.f32 %v1163, %v1289
      %v1344 = vadd.f32 %v1168, %v1294
      %v1345 = vadd.f32 %v1171, %v1297
      %v1346 = vadd.f32 %v1176, %v1302
      %v1347 = vadd.f32 %v1179, %v1305
      %v1348 = vadd.f32 %v1184, %v1310
      %v1349 = vadd.f32 %v1187, %v1313
      %v1350 = vadd.f32 %v1192, %v1318
      %v1351 = vadd.f32 %v1195, %v1321
      %v1352 = vadd.f32 %v1200, %v1326
      %v1353 = vadd.f32 %v1203, %v1329
      %v1354 = vadd.f32 %v1208, %v1334
      %v1355 = vadd.f32 %v1211, %v1337
      %v1356 = vld [vmem:[%s2] sm:$0x1]
      %v1358 = vlaneseq
      %v1359 = vshrl.u32 %v1358, 7
      %v1360 = vsub.s32 0, %v1359
      %v1361 = vrot.slane %v1356, %v1360
      %v1363 = vadd.f32 %v1340, %v1361
      %v1364 = vadd.f32 %v1341, %v1361
      %v1365 = vadd.f32 %v1342, %v1361
      %v1366 = vadd.f32 %v1343, %v1361
      %v1367 = vadd.f32 %v1344, %v1361
      %v1368 = vadd.f32 %v1345, %v1361
      %v1369 = vadd.f32 %v1346, %v1361
      %v1370 = vadd.f32 %v1347, %v1361
      %v1371 = vadd.f32 %v1348, %v1361
      %v1372 = vadd.f32 %v1349, %v1361
      %v1373 = vadd.f32 %v1350, %v1361
      %v1374 = vadd.f32 %v1351, %v1361
      %v1375 = vadd.f32 %v1352, %v1361
      %v1376 = vadd.f32 %v1353, %v1361
      %v1377 = vadd.f32 %v1354, %v1361
      %v1378 = vadd.f32 %v1355, %v1361
      %vm1379 = vcmp.gt.f32.partialorder %v1363, 0.0
      %vm1380 = vcmp.gt.f32.partialorder %v1364, 0.0
      %vm1381 = vcmp.gt.f32.partialorder %v1365, 0.0
      %vm1382 = vcmp.gt.f32.partialorder %v1366, 0.0
      %vm1383 = vcmp.gt.f32.partialorder %v1367, 0.0
      %vm1384 = vcmp.gt.f32.partialorder %v1368, 0.0
      %vm1385 = vcmp.gt.f32.partialorder %v1369, 0.0
      %vm1386 = vcmp.gt.f32.partialorder %v1370, 0.0
      %vm1387 = vcmp.gt.f32.partialorder %v1371, 0.0
      %vm1388 = vcmp.gt.f32.partialorder %v1372, 0.0
      %vm1389 = vcmp.gt.f32.partialorder %v1373, 0.0
      %vm1390 = vcmp.gt.f32.partialorder %v1374, 0.0
      %vm1391 = vcmp.gt.f32.partialorder %v1375, 0.0
      %vm1392 = vcmp.gt.f32.partialorder %v1376, 0.0
      %vm1393 = vcmp.gt.f32.partialorder %v1377, 0.0
      %vm1394 = vcmp.gt.f32.partialorder %v1378, 0.0
      %v1395 = vmin.f32 %v1363, 0.0
      %v1396 = vmin.f32 %v1364, 0.0
      %v1397 = vmin.f32 %v1365, 0.0
      %v1398 = vmin.f32 %v1366, 0.0
      %v1399 = vmin.f32 %v1367, 0.0
      %v1400 = vmin.f32 %v1368, 0.0
      %v1401 = vmin.f32 %v1369, 0.0
      %v1402 = vmin.f32 %v1370, 0.0
      %v1403 = vmin.f32 %v1371, 0.0
      %v1404 = vmin.f32 %v1372, 0.0
      %v1405 = vmin.f32 %v1373, 0.0
      %v1406 = vmin.f32 %v1374, 0.0
      %v1407 = vmin.f32 %v1375, 0.0
      %v1408 = vmin.f32 %v1376, 0.0
      %v1409 = vmin.f32 %v1377, 0.0
      %v1410 = vmin.f32 %v1378, 0.0
      %v1411 = vmul.f32 %v1395, 1.442695
      %v1412 = vpow.pop %v1411
      %v1413 = vmul.f32 %v1396, 1.442695
      %v1414 = vpow.pop %v1413
      %v1415 = vmul.f32 %v1397, 1.442695
      %v1416 = vpow.pop %v1415
      %v1417 = vmul.f32 %v1398, 1.442695
      %v1418 = vpow.pop %v1417
      %v1419 = vmul.f32 %v1399, 1.442695
      %v1420 = vpow.pop %v1419
      %v1421 = vmul.f32 %v1400, 1.442695
      %v1422 = vpow.pop %v1421
      %v1423 = vmul.f32 %v1401, 1.442695
      %v1424 = vpow.pop %v1423
      %v1425 = vmul.f32 %v1402, 1.442695
      %v1426 = vpow.pop %v1425
      %v1427 = vmul.f32 %v1403, 1.442695
      %v1428 = vpow.pop %v1427
      %v1429 = vmul.f32 %v1404, 1.442695
      %v1430 = vpow.pop %v1429
      %v1431 = vmul.f32 %v1405, 1.442695
      %v1432 = vpow.pop %v1431
      %v1433 = vmul.f32 %v1406, 1.442695
      %v1434 = vpow.pop %v1433
      %v1435 = vmul.f32 %v1407, 1.442695
      %v1436 = vpow.pop %v1435
      %v1437 = vmul.f32 %v1408, 1.442695
      %v1438 = vpow.pop %v1437
      %v1439 = vmul.f32 %v1409, 1.442695
      %v1440 = vpow.pop %v1439
      %v1441 = vmul.f32 %v1410, 1.442695
      %v1442 = vpow.pop %v1441
      %v1443 = vsub.f32 %v1412, 1.0
      %v1444 = vsub.f32 %v1414, 1.0
      %v1445 = vsub.f32 %v1416, 1.0
      %v1446 = vsub.f32 %v1418, 1.0
      %v1447 = vsub.f32 %v1420, 1.0
      %v1448 = vsub.f32 %v1422, 1.0
      %v1449 = vsub.f32 %v1424, 1.0
      %v1450 = vsub.f32 %v1426, 1.0
      %v1451 = vsub.f32 %v1428, 1.0
      %v1452 = vsub.f32 %v1430, 1.0
      %v1453 = vsub.f32 %v1432, 1.0
      %v1454 = vsub.f32 %v1434, 1.0
      %v1455 = vsub.f32 %v1436, 1.0
      %v1456 = vsub.f32 %v1438, 1.0
      %v1457 = vsub.f32 %v1440, 1.0
      %v1458 = vsub.f32 %v1442, 1.0
      %v1459 = vsel %vm1379, %v1363, %v1443
      %v1460 = vsel %vm1380, %v1364, %v1444
      %v1461 = vsel %vm1381, %v1365, %v1445
      %v1462 = vsel %vm1382, %v1366, %v1446
      %v1463 = vsel %vm1383, %v1367, %v1447
      %v1464 = vsel %vm1384, %v1368, %v1448
      %v1465 = vsel %vm1385, %v1369, %v1449
      %v1466 = vsel %vm1386, %v1370, %v1450
      %v1467 = vsel %vm1387, %v1371, %v1451
      %v1468 = vsel %vm1388, %v1372, %v1452
      %v1469 = vsel %vm1389, %v1373, %v1453
      %v1470 = vsel %vm1390, %v1374, %v1454
      %v1471 = vsel %vm1391, %v1375, %v1455
      %v1472 = vsel %vm1392, %v1376, %v1456
      %v1473 = vsel %vm1393, %v1377, %v1457
      %v1474 = vsel %vm1394, %v1378, %v1458
      %vm1475 = vcmask 64512
      %1476 = vst.msk [vmem:[#allocation2] sm:$0xff] %vm1475, 0.0
      %1477 = vst.msk [vmem:[#allocation2 + $0x8] sm:$0xff] %vm1475, 0.0
      %vm1478 = vcmask 58368
      %1479 = vst.msk [vmem:[#allocation2 + $0x10] sm:$0x3] %vm1478, 0.0
      %s1480 = scalar_lea.vmem [#allocation2], 216
      %1481 = vst.msk [vmem:[%s1480] sm:$0xff] %vm1475, 0.0
      %1482 = vst.msk [vmem:[%s1480 + $0x8] sm:$0xff] %vm1475, 0.0
      %1483 = vst.msk [vmem:[%s1480 + $0x10] sm:$0x3] %vm1478, 0.0
      %vm1484 = vcmask 57344
      %1485 = vst.msk [vmem:[#allocation2] sm:$0x1] %vm1484, 0.0
      %1486 = vst.msk [vmem:[#allocation2 + $0x18] sm:$0x1] %vm1484, 0.0
      %1487 = vst.msk [vmem:[#allocation2 + $0x30] sm:$0x1] %vm1484, 0.0
      %1488 = vst.msk [vmem:[#allocation2 + $0x48] sm:$0x1] %vm1484, 0.0
      %1489 = vst.msk [vmem:[#allocation2 + $0x60] sm:$0x1] %vm1484, 0.0
      %1490 = vst.msk [vmem:[#allocation2 + $0x78] sm:$0x1] %vm1484, 0.0
      %1491 = vst.msk [vmem:[#allocation2 + $0x90] sm:$0x1] %vm1484, 0.0
      %1492 = vst.msk [vmem:[#allocation2 + $0xa8] sm:$0x1] %vm1484, 0.0
      %1493 = vst.msk [vmem:[#allocation2 + $0xc0] sm:$0x1] %vm1484, 0.0
      %1494 = vst.msk [vmem:[#allocation2 + $0xd8] sm:$0x1] %vm1484, 0.0
      %1495 = vst.msk [vmem:[#allocation2 + $0x11] sm:$0x1] %vm1484, 0.0
      %1496 = vst.msk [vmem:[#allocation2 + $0x29] sm:$0x1] %vm1484, 0.0
      %1497 = vst.msk [vmem:[#allocation2 + $0x41] sm:$0x1] %vm1484, 0.0
      %1498 = vst.msk [vmem:[#allocation2 + $0x59] sm:$0x1] %vm1484, 0.0
      %1499 = vst.msk [vmem:[#allocation2 + $0x71] sm:$0x1] %vm1484, 0.0
      %1500 = vst.msk [vmem:[#allocation2 + $0x89] sm:$0x1] %vm1484, 0.0
      %1501 = vst.msk [vmem:[#allocation2 + $0xa1] sm:$0x1] %vm1484, 0.0
      %1502 = vst.msk [vmem:[#allocation2 + $0xb9] sm:$0x1] %vm1484, 0.0
      %1503 = vst.msk [vmem:[#allocation2 + $0xd1] sm:$0x1] %vm1484, 0.0
      %1504 = vst.msk [vmem:[#allocation2 + $0xe9] sm:$0x1] %vm1484, 0.0
      %s1505 = scalar_lea.vmem [#allocation2], 24
      %1506 = vst.msk [vmem:[%s1505 + $0x1] sm:$0xff] %vm1475, %v1459
      %1507 = vst.msk [vmem:[%s1505 + $0x9] sm:$0xff] %vm1475, %v1460
      %1508 = vst.msk [vmem:[%s1505 + $0x19] sm:$0xff] %vm1475, %v1461
      %1509 = vst.msk [vmem:[%s1505 + $0x21] sm:$0xff] %vm1475, %v1462
      %1510 = vst.msk [vmem:[%s1505 + $0x31] sm:$0xff] %vm1475, %v1463
      %1511 = vst.msk [vmem:[%s1505 + $0x39] sm:$0xff] %vm1475, %v1464
      %1512 = vst.msk [vmem:[%s1505 + $0x49] sm:$0xff] %vm1475, %v1465
      %1513 = vst.msk [vmem:[%s1505 + $0x51] sm:$0xff] %vm1475, %v1466
      %1514 = vst.msk [vmem:[%s1505 + $0x61] sm:$0xff] %vm1475, %v1467
      %1515 = vst.msk [vmem:[%s1505 + $0x69] sm:$0xff] %vm1475, %v1468
      %1516 = vst.msk [vmem:[%s1505 + $0x79] sm:$0xff] %vm1475, %v1469
      %1517 = vst.msk [vmem:[%s1505 + $0x81] sm:$0xff] %vm1475, %v1470
      %1518 = vst.msk [vmem:[%s1505 + $0x91] sm:$0xff] %vm1475, %v1471
      %1519 = vst.msk [vmem:[%s1505 + $0x99] sm:$0xff] %vm1475, %v1472
      %1520 = vst.msk [vmem:[%s1505 + $0xa9] sm:$0xff] %vm1475, %v1473
      %1521 = vst.msk [vmem:[%s1505 + $0xb1] sm:$0xff] %vm1475, %v1474
      %v1522 = vld [vmem:[#allocation2] sm:$0xff]
      %v1523 = vld [vmem:[#allocation2 + $0x8] sm:$0xff]
      %v1524 = vld [vmem:[#allocation2 + $0x10] sm:$0x3]
      %v1525 = vld [vmem:[#allocation2 + $0x18] sm:$0xff]
      %v1526 = vld [vmem:[#allocation2 + $0x20] sm:$0xff]
      %v1527 = vld [vmem:[#allocation2 + $0x28] sm:$0x3]
      %v1528 = vld [vmem:[#allocation2 + $0x30] sm:$0xff]
      %v1529 = vld [vmem:[#allocation2 + $0x38] sm:$0xff]
      %v1530 = vld [vmem:[#allocation2 + $0x40] sm:$0x3]
      %v1531 = vld [vmem:[#allocation2 + $0x48] sm:$0xff]
      %v1532 = vld [vmem:[#allocation2 + $0x50] sm:$0xff]
      %v1533 = vld [vmem:[#allocation2 + $0x58] sm:$0x3]
      %v1534 = vld [vmem:[#allocation2 + $0x60] sm:$0xff]
      %v1535 = vld [vmem:[#allocation2 + $0x68] sm:$0xff]
      %v1536 = vld [vmem:[#allocation2 + $0x70] sm:$0x3]
      %v1537 = vld [vmem:[#allocation2 + $0x78] sm:$0xff]
      %v1538 = vld [vmem:[#allocation2 + $0x80] sm:$0xff]
      %v1539 = vld [vmem:[#allocation2 + $0x88] sm:$0x3]
      %v1540 = vld [vmem:[#allocation2 + $0x90] sm:$0xff]
      %v1541 = vld [vmem:[#allocation2 + $0x98] sm:$0xff]
      %v1542 = vld [vmem:[#allocation2 + $0xa0] sm:$0x3]
      %v1543 = vld [vmem:[#allocation2 + $0xa8] sm:$0xff]
      %v1544 = vld [vmem:[#allocation2 + $0xb0] sm:$0xff]
      %v1545 = vld [vmem:[#allocation2 + $0xb8] sm:$0x3]
      %v1546 = vld [vmem:[#allocation2 + $0xc0] sm:$0xff]
      %v1547 = vld [vmem:[#allocation2 + $0xc8] sm:$0xff]
      %v1548 = vld [vmem:[#allocation2 + $0xd0] sm:$0x3]
      %v1576 = vrot.slane %v1522, 1
      %v1577 = vrot.slane %v1523, 1
      %v1578 = vsel %vm460, %v1576, %v1577
      %v1579 = vrot.slane %v1524, 1
      %v1580 = vsel %vm460, %v1577, %v1579
      %v1581 = vrot.slane %v1525, 1
      %v1582 = vrot.slane %v1526, 1
      %v1583 = vsel %vm460, %v1581, %v1582
      %v1584 = vrot.slane %v1527, 1
      %v1585 = vsel %vm460, %v1582, %v1584
      %v1586 = vrot.slane %v1528, 1
      %v1587 = vrot.slane %v1529, 1
      %v1588 = vsel %vm460, %v1586, %v1587
      %v1589 = vrot.slane %v1530, 1
      %v1590 = vsel %vm460, %v1587, %v1589
      %v1591 = vrot.slane %v1531, 1
      %v1592 = vrot.slane %v1532, 1
      %v1593 = vsel %vm460, %v1591, %v1592
      %v1594 = vrot.slane %v1533, 1
      %v1595 = vsel %vm460, %v1592, %v1594
      %v1596 = vrot.slane %v1534, 1
      %v1597 = vrot.slane %v1535, 1
      %v1598 = vsel %vm460, %v1596, %v1597
      %v1599 = vrot.slane %v1536, 1
      %v1600 = vsel %vm460, %v1597, %v1599
      %v1601 = vrot.slane %v1537, 1
      %v1602 = vrot.slane %v1538, 1
      %v1603 = vsel %vm460, %v1601, %v1602
      %v1604 = vrot.slane %v1539, 1
      %v1605 = vsel %vm460, %v1602, %v1604
      %v1606 = vrot.slane %v1540, 1
      %v1607 = vrot.slane %v1541, 1
      %v1608 = vsel %vm460, %v1606, %v1607
      %v1609 = vrot.slane %v1542, 1
      %v1610 = vsel %vm460, %v1607, %v1609
      %v1611 = vrot.slane %v1543, 1
      %v1612 = vrot.slane %v1544, 1
      %v1613 = vsel %vm460, %v1611, %v1612
      %v1614 = vrot.slane %v1545, 1
      %v1615 = vsel %vm460, %v1612, %v1614
      %v1616 = vrot.slane %v1546, 1
      %v1617 = vrot.slane %v1547, 1
      %v1618 = vsel %vm460, %v1616, %v1617
      %v1619 = vrot.slane %v1548, 1
      %v1620 = vsel %vm460, %v1617, %v1619
      %1621 = vrot.lane.b32.xlu0 %v1578, 8
      %v1622 = vpop.permute.xlu0 %1621
      %1623 = vrot.lane.b32.xlu0 %v1580, 8
      %v1624 = vpop.permute.xlu0 %1623
      %1625 = vrot.lane.b32.xlu0 %v1583, 8
      %v1626 = vpop.permute.xlu0 %1625
      %1627 = vrot.lane.b32.xlu0 %v1585, 8
      %v1628 = vpop.permute.xlu0 %1627
      %1629 = vrot.lane.b32.xlu0 %v1588, 8
      %v1630 = vpop.permute.xlu0 %1629
      %1631 = vrot.lane.b32.xlu0 %v1590, 8
      %v1632 = vpop.permute.xlu0 %1631
      %1633 = vrot.lane.b32.xlu0 %v1593, 8
      %v1634 = vpop.permute.xlu0 %1633
      %1635 = vrot.lane.b32.xlu0 %v1595, 8
      %v1636 = vpop.permute.xlu0 %1635
      %1637 = vrot.lane.b32.xlu0 %v1598, 8
      %v1638 = vpop.permute.xlu0 %1637
      %1639 = vrot.lane.b32.xlu0 %v1600, 8
      %v1640 = vpop.permute.xlu0 %1639
      %1641 = vrot.lane.b32.xlu0 %v1603, 8
      %v1642 = vpop.permute.xlu0 %1641
      %1643 = vrot.lane.b32.xlu0 %v1605, 8
      %v1644 = vpop.permute.xlu0 %1643
      %1645 = vrot.lane.b32.xlu0 %v1608, 8
      %v1646 = vpop.permute.xlu0 %1645
      %1647 = vrot.lane.b32.xlu0 %v1610, 8
      %v1648 = vpop.permute.xlu0 %1647
      %1649 = vrot.lane.b32.xlu0 %v1613, 8
      %v1650 = vpop.permute.xlu0 %1649
      %1651 = vrot.lane.b32.xlu0 %v1615, 8
      %v1652 = vpop.permute.xlu0 %1651
      %1653 = vrot.lane.b32.xlu0 %v1618, 8
      %v1654 = vpop.permute.xlu0 %1653
      %1655 = vrot.lane.b32.xlu0 %v1620, 8
      %v1656 = vpop.permute.xlu0 %1655
      %v1675 = vrot.slane %v1522, 2
      %v1676 = vrot.slane %v1523, 2
      %v1677 = vsel %vm648, %v1675, %v1676
      %v1678 = vrot.slane %v1524, 2
      %v1679 = vsel %vm648, %v1676, %v1678
      %v1680 = vrot.slane %v1525, 2
      %v1681 = vrot.slane %v1526, 2
      %v1682 = vsel %vm648, %v1680, %v1681
      %v1683 = vrot.slane %v1527, 2
      %v1684 = vsel %vm648, %v1681, %v1683
      %v1685 = vrot.slane %v1528, 2
      %v1686 = vrot.slane %v1529, 2
      %v1687 = vsel %vm648, %v1685, %v1686
      %v1688 = vrot.slane %v1530, 2
      %v1689 = vsel %vm648, %v1686, %v1688
      %v1690 = vrot.slane %v1531, 2
      %v1691 = vrot.slane %v1532, 2
      %v1692 = vsel %vm648, %v1690, %v1691
      %v1693 = vrot.slane %v1533, 2
      %v1694 = vsel %vm648, %v1691, %v1693
      %v1695 = vrot.slane %v1534, 2
      %v1696 = vrot.slane %v1535, 2
      %v1697 = vsel %vm648, %v1695, %v1696
      %v1698 = vrot.slane %v1536, 2
      %v1699 = vsel %vm648, %v1696, %v1698
      %v1700 = vrot.slane %v1537, 2
      %v1701 = vrot.slane %v1538, 2
      %v1702 = vsel %vm648, %v1700, %v1701
      %v1703 = vrot.slane %v1539, 2
      %v1704 = vsel %vm648, %v1701, %v1703
      %v1705 = vrot.slane %v1540, 2
      %v1706 = vrot.slane %v1541, 2
      %v1707 = vsel %vm648, %v1705, %v1706
      %v1708 = vrot.slane %v1542, 2
      %v1709 = vsel %vm648, %v1706, %v1708
      %v1710 = vrot.slane %v1543, 2
      %v1711 = vrot.slane %v1544, 2
      %v1712 = vsel %vm648, %v1710, %v1711
      %v1713 = vrot.slane %v1545, 2
      %v1714 = vsel %vm648, %v1711, %v1713
      %v1715 = vrot.slane %v1546, 2
      %v1716 = vrot.slane %v1547, 2
      %v1717 = vsel %vm648, %v1715, %v1716
      %v1718 = vrot.slane %v1548, 2
      %v1719 = vsel %vm648, %v1716, %v1718
      %1720 = vrot.lane.b32.xlu0 %v1677, 16
      %v1721 = vpop.permute.xlu0 %1720
      %1722 = vrot.lane.b32.xlu0 %v1679, 16
      %v1723 = vpop.permute.xlu0 %1722
      %1724 = vrot.lane.b32.xlu0 %v1682, 16
      %v1725 = vpop.permute.xlu0 %1724
      %1726 = vrot.lane.b32.xlu0 %v1684, 16
      %v1727 = vpop.permute.xlu0 %1726
      %1728 = vrot.lane.b32.xlu0 %v1687, 16
      %v1729 = vpop.permute.xlu0 %1728
      %1730 = vrot.lane.b32.xlu0 %v1689, 16
      %v1731 = vpop.permute.xlu0 %1730
      %1732 = vrot.lane.b32.xlu0 %v1692, 16
      %v1733 = vpop.permute.xlu0 %1732
      %1734 = vrot.lane.b32.xlu0 %v1694, 16
      %v1735 = vpop.permute.xlu0 %1734
      %1736 = vrot.lane.b32.xlu0 %v1697, 16
      %v1737 = vpop.permute.xlu0 %1736
      %1738 = vrot.lane.b32.xlu0 %v1699, 16
      %v1739 = vpop.permute.xlu0 %1738
      %1740 = vrot.lane.b32.xlu0 %v1702, 16
      %v1741 = vpop.permute.xlu0 %1740
      %1742 = vrot.lane.b32.xlu0 %v1704, 16
      %v1743 = vpop.permute.xlu0 %1742
      %1744 = vrot.lane.b32.xlu0 %v1707, 16
      %v1745 = vpop.permute.xlu0 %1744
      %1746 = vrot.lane.b32.xlu0 %v1709, 16
      %v1747 = vpop.permute.xlu0 %1746
      %1748 = vrot.lane.b32.xlu0 %v1712, 16
      %v1749 = vpop.permute.xlu0 %1748
      %1750 = vrot.lane.b32.xlu0 %v1714, 16
      %v1751 = vpop.permute.xlu0 %1750
      %1752 = vrot.lane.b32.xlu0 %v1717, 16
      %v1753 = vpop.permute.xlu0 %1752
      %1754 = vrot.lane.b32.xlu0 %v1719, 16
      %v1755 = vpop.permute.xlu0 %1754
      %v1774 = vsel %vm1475, %v1522, %v1622
      %v1775 = vsel %vm1475, %v1523, %v1624
      %v1776 = vsel %vm1475, %v1525, %v1626
      %v1777 = vsel %vm1475, %v1526, %v1628
      %v1778 = vsel %vm1475, %v1528, %v1630
      %v1779 = vsel %vm1475, %v1529, %v1632
      %v1780 = vsel %vm1475, %v1531, %v1634
      %v1781 = vsel %vm1475, %v1532, %v1636
      %v1782 = vsel %vm1475, %v1534, %v1638
      %v1783 = vsel %vm1475, %v1535, %v1640
      %v1784 = vsel %vm1475, %v1537, %v1642
      %v1785 = vsel %vm1475, %v1538, %v1644
      %v1786 = vsel %vm1475, %v1540, %v1646
      %v1787 = vsel %vm1475, %v1541, %v1648
      %v1788 = vsel %vm1475, %v1543, %v1650
      %v1789 = vsel %vm1475, %v1544, %v1652
      %v1790 = vsel %vm1475, %v1546, %v1654
      %v1791 = vsel %vm1475, %v1547, %v1656
      %v1792 = vsel %vm836, %v1774, %v1721
      %v1793 = vsel %vm836, %v1775, %v1723
      %v1794 = vsel %vm836, %v1776, %v1725
      %v1795 = vsel %vm836, %v1777, %v1727
      %v1796 = vsel %vm836, %v1778, %v1729
      %v1797 = vsel %vm836, %v1779, %v1731
      %v1798 = vsel %vm836, %v1780, %v1733
      %v1799 = vsel %vm836, %v1781, %v1735
      %v1800 = vsel %vm836, %v1782, %v1737
      %v1801 = vsel %vm836, %v1783, %v1739
      %v1802 = vsel %vm836, %v1784, %v1741
      %v1803 = vsel %vm836, %v1785, %v1743
      %v1804 = vsel %vm836, %v1786, %v1745
      %v1805 = vsel %vm836, %v1787, %v1747
      %v1806 = vsel %vm836, %v1788, %v1749
      %v1807 = vsel %vm836, %v1789, %v1751
      %v1808 = vsel %vm836, %v1790, %v1753
      %v1809 = vsel %vm836, %v1791, %v1755
      %v1810 = vld [vmem:[%s3] sm:$0xf]
      %v1811 = vld [vmem:[%s3 + $0x4] sm:$0xf]
      %v1812 = vld [vmem:[%s3 + $0x8] sm:$0xf]
      %v1813 = vpack.c.bf16 %v1793, %v1792
      %v1814 = vpack.c.bf16 %v1797, %v1796
      %v1815 = vpack.c.bf16 %v1801, %v1800
      %v1816 = vpack.c.bf16 %v1805, %v1804
      %s1817 = scalar_lea.vmem %s3, 12
      %v1818 = vld [vmem:[%s1817] sm:$0xf]
      %v1819 = vld [vmem:[%s1817 + $0x4] sm:$0xf]
      %v1820 = vld [vmem:[%s1817 + $0x8] sm:$0xf]
      %v1821 = vpack.c.bf16 %v1795, %v1794
      %v1822 = vpack.c.bf16 %v1799, %v1798
      %v1823 = vpack.c.bf16 %v1803, %v1802
      %v1824 = vpack.c.bf16 %v1807, %v1806
      %v1828 = vunpack.c.l.b16 %v1818
      %v1829 = vunpack.c.l.b16 %v1819
      %v1830 = vunpack.c.l.b16 %v1820
      %v1831 = vpack.c.b16 %v1829, %v1828
      %v1832 = vpack.c.b16 %v1830, %v1830
      %vm1834 = vcmask 195584
      %v1836 = vsel %vm1834, %v1821, 0
      %v1839 = vsel %vm1834, %v1822, 0
      %v1842 = vsel %vm1834, %v1823, 0
      %v1845 = vsel %vm1834, %v1824, 0
      %vm1847 = vcmask 1043456
      %v1849 = vsel %vm1847, %v1832, 0
      %1851 = vmatprep.subr.bf16.mxu0 0
      %1852 = vmatpush1.bf16.msra.mxu0 %v1831
      %1853 = vmatprep.subr.bf16.mxu0 0
      %1854 = vmatpush1.bf16.msra.mxu0 %v1849
      %1855 = vmatprep.subr.bf16.mxu0 0
      %1856 = vmatpush1.bf16.msra.mxu0 0
      %1857 = vmatprep.subr.bf16.mxu0 0
      %1858 = vmatpush1.bf16.msra.mxu0 0
      %1859 = vmatprep.subr.bf16.mxu0 0
      %1860 = vmatpush1.bf16.msra.mxu0 0
      %1861 = vmatprep.subr.bf16.mxu0 0
      %1862 = vmatpush1.bf16.msra.mxu0 0
      %1863 = vmatprep.subr.bf16.mxu0 0
      %1864 = vmatpush1.bf16.msra.mxu0 0
      %1865 = vmatprep.subr.bf16.mxu0 0
      %1866 = vmatpush1.bf16.msra.mxu0 0
      %1867 = vmatprep.subr.bf16.mxu0 0
      %1868 = vmatpush1.bf16.msra.mxu0 0
      %1869 = vmatprep.subr.bf16.mxu0 0
      %1870 = vmatpush1.bf16.msra.mxu0 0
      %1871 = vmatprep.subr.bf16.mxu0 0
      %1872 = vmatpush1.bf16.msra.mxu0 0
      %1873 = vmatprep.subr.bf16.mxu0 0
      %1874 = vmatpush1.bf16.msra.mxu0 0
      %1875 = vmatprep.subr.bf16.mxu0 0
      %1876 = vmatpush1.bf16.msra.mxu0 0
      %1877 = vmatprep.subr.bf16.mxu0 0
      %1878 = vmatpush1.bf16.msra.mxu0 0
      %1879 = vmatprep.subr.bf16.mxu0 0
      %1880 = vmatpush1.bf16.msra.mxu0 0
      %1881 = vmatprep.subr.bf16.mxu0 0
      %1882 = vmatpush1.bf16.msra.mxu0 0
      %1883 = vmatprep.mubr.bf16.mxu0 0
      %1884 = vmatmul.mubr.bf16.gmra.mrb[0].mxu0 %v1836
      %v1885 = vpop.f32.mrb[0].mxu0
      %v1886 = vadd.f32 0.0, %v1885
      %v1887 = vpop.f32.mrb[0].mxu0
      %v1888 = vpop.f32.mrb[0].mxu0
      %v1889 = vadd.f32 0.0, %v1888
      %v1890 = vpop.f32.mrb[0].mxu0
      %1891 = vmatprep.mubr.bf16.mxu0 0
      %1892 = vmatmul.mubr.bf16.gmra.mrb[0].mxu0 %v1839
      %v1893 = vpop.f32.mrb[0].mxu0
      %v1894 = vadd.f32 0.0, %v1893
      %v1895 = vpop.f32.mrb[0].mxu0
      %v1896 = vpop.f32.mrb[0].mxu0
      %v1897 = vadd.f32 0.0, %v1896
      %v1898 = vpop.f32.mrb[0].mxu0
      %1899 = vmatprep.mubr.bf16.mxu0 0
      %1900 = vmatmul.mubr.bf16.gmra.mrb[0].mxu0 %v1842
      %v1901 = vpop.f32.mrb[0].mxu0
      %v1902 = vadd.f32 0.0, %v1901
      %v1903 = vpop.f32.mrb[0].mxu0
      %v1904 = vpop.f32.mrb[0].mxu0
      %v1905 = vadd.f32 0.0, %v1904
      %v1906 = vpop.f32.mrb[0].mxu0
      %1907 = vmatprep.mubr.bf16.mxu0 0
      %1908 = vmatmul.mubr.bf16.gmra.mrb[0].mxu0 %v1845
      %v1909 = vpop.f32.mrb[0].mxu0
      %v1910 = vadd.f32 0.0, %v1909
      %v1911 = vpop.f32.mrb[0].mxu0
      %v1912 = vpop.f32.mrb[0].mxu0
      %v1913 = vadd.f32 0.0, %v1912
      %v1914 = vpop.f32.mrb[0].mxu0
      %1915 = vdwg.mxu0
      %v1919 = vunpack.c.l.b16 %v1810
      %v1920 = vunpack.c.l.b16 %v1811
      %v1921 = vunpack.c.l.b16 %v1812
      %v1922 = vpack.c.b16 %v1920, %v1919
      %v1923 = vpack.c.b16 %v1921, %v1921
      %v1926 = vsel %vm1834, %v1813, 0
      %v1929 = vsel %vm1834, %v1814, 0
      %v1932 = vsel %vm1834, %v1815, 0
      %v1935 = vsel %vm1834, %v1816, 0
      %v1938 = vsel %vm1847, %v1923, 0
      %1940 = vmatprep.subr.bf16.mxu0 0
      %1941 = vmatpush1.bf16.msra.mxu0 %v1922
      %1942 = vmatprep.subr.bf16.mxu0 0
      %1943 = vmatpush1.bf16.msra.mxu0 %v1938
      %1944 = vmatprep.subr.bf16.mxu0 0
      %1945 = vmatpush1.bf16.msra.mxu0 0
      %1946 = vmatprep.subr.bf16.mxu0 0
      %1947 = vmatpush1.bf16.msra.mxu0 0
      %1948 = vmatprep.subr.bf16.mxu0 0
      %1949 = vmatpush1.bf16.msra.mxu0 0
      %1950 = vmatprep.subr.bf16.mxu0 0
      %1951 = vmatpush1.bf16.msra.mxu0 0
      %1952 = vmatprep.subr.bf16.mxu0 0
      %1953 = vmatpush1.bf16.msra.mxu0 0
      %1954 = vmatprep.subr.bf16.mxu0 0
      %1955 = vmatpush1.bf16.msra.mxu0 0
      %1956 = vmatprep.subr.bf16.mxu0 0
      %1957 = vmatpush1.bf16.msra.mxu0 0
      %1958 = vmatprep.subr.bf16.mxu0 0
      %1959 = vmatpush1.bf16.msra.mxu0 0
      %1960 = vmatprep.subr.bf16.mxu0 0
      %1961 = vmatpush1.bf16.msra.mxu0 0
      %1962 = vmatprep.subr.bf16.mxu0 0
      %1963 = vmatpush1.bf16.msra.mxu0 0
      %1964 = vmatprep.subr.bf16.mxu0 0
      %1965 = vmatpush1.bf16.msra.mxu0 0
      %1966 = vmatprep.subr.bf16.mxu0 0
      %1967 = vmatpush1.bf16.msra.mxu0 0
      %1968 = vmatprep.subr.bf16.mxu0 0
      %1969 = vmatpush1.bf16.msra.mxu0 0
      %1970 = vmatprep.subr.bf16.mxu0 0
      %1971 = vmatpush1.bf16.msra.mxu0 0
      %1972 = vmatprep.mubr.bf16.mxu0 0
      %1973 = vmatmul.mubr.bf16.gmra.mrb[0].mxu0 %v1926
      %v1974 = vpop.f32.mrb[0].mxu0
      %v1975 = vadd.f32 %v1886, %v1974
      %v1976 = vpop.f32.mrb[0].mxu0
      %v1977 = vpop.f32.mrb[0].mxu0
      %v1978 = vadd.f32 %v1889, %v1977
      %v1979 = vpop.f32.mrb[0].mxu0
      %1980 = vmatprep.mubr.bf16.mxu0 0
      %1981 = vmatmul.mubr.bf16.gmra.mrb[0].mxu0 %v1929
      %v1982 = vpop.f32.mrb[0].mxu0
      %v1983 = vadd.f32 %v1894, %v1982
      %v1984 = vpop.f32.mrb[0].mxu0
      %v1985 = vpop.f32.mrb[0].mxu0
      %v1986 = vadd.f32 %v1897, %v1985
      %v1987 = vpop.f32.mrb[0].mxu0
      %1988 = vmatprep.mubr.bf16.mxu0 0
      %1989 = vmatmul.mubr.bf16.gmra.mrb[0].mxu0 %v1932
      %v1990 = vpop.f32.mrb[0].mxu0
      %v1991 = vadd.f32 %v1902, %v1990
      %v1992 = vpop.f32.mrb[0].mxu0
      %v1993 = vpop.f32.mrb[0].mxu0
      %v1994 = vadd.f32 %v1905, %v1993
      %v1995 = vpop.f32.mrb[0].mxu0
      %1996 = vmatprep.mubr.bf16.mxu0 0
      %1997 = vmatmul.mubr.bf16.gmra.mrb[0].mxu0 %v1935
      %v1998 = vpop.f32.mrb[0].mxu0
      %v1999 = vadd.f32 %v1910, %v1998
      %v2000 = vpop.f32.mrb[0].mxu0
      %v2001 = vpop.f32.mrb[0].mxu0
      %v2002 = vadd.f32 %v1913, %v2001
      %v2003 = vpop.f32.mrb[0].mxu0
      %2004 = vdwg.mxu0
      %s2005 = scalar_lea.vmem %s3, 24
      %v2006 = vld [vmem:[%s2005] sm:$0xf]
      %v2007 = vld [vmem:[%s2005 + $0x4] sm:$0xf]
      %v2008 = vld [vmem:[%s2005 + $0x8] sm:$0xf]
      %v2009 = vpack.c.bf16 %v1809, %v1808
      %v2013 = vunpack.c.l.b16 %v2006
      %v2014 = vunpack.c.l.b16 %v2007
      %v2015 = vunpack.c.l.b16 %v2008
      %v2016 = vpack.c.b16 %v2014, %v2013
      %v2017 = vpack.c.b16 %v2015, %v2015
      %v2020 = vsel %vm1834, %v2009, 0
      %v2023 = vsel %vm1847, %v2017, 0
      %2025 = vmatprep.subr.bf16.mxu0 0
      %2026 = vmatpush1.bf16.msra.mxu0 %v2016
      %2027 = vmatprep.subr.bf16.mxu0 0
      %2028 = vmatpush1.bf16.msra.mxu0 %v2023
      %2029 = vmatprep.subr.bf16.mxu0 0
      %2030 = vmatpush1.bf16.msra.mxu0 0
      %2031 = vmatprep.subr.bf16.mxu0 0
      %2032 = vmatpush1.bf16.msra.mxu0 0
      %2033 = vmatprep.subr.bf16.mxu0 0
      %2034 = vmatpush1.bf16.msra.mxu0 0
      %2035 = vmatprep.subr.bf16.mxu0 0
      %2036 = vmatpush1.bf16.msra.mxu0 0
      %2037 = vmatprep.subr.bf16.mxu0 0
      %2038 = vmatpush1.bf16.msra.mxu0 0
      %2039 = vmatprep.subr.bf16.mxu0 0
      %2040 = vmatpush1.bf16.msra.mxu0 0
      %2041 = vmatprep.subr.bf16.mxu0 0
      %2042 = vmatpush1.bf16.msra.mxu0 0
      %2043 = vmatprep.subr.bf16.mxu0 0
      %2044 = vmatpush1.bf16.msra.mxu0 0
      %2045 = vmatprep.subr.bf16.mxu0 0
      %2046 = vmatpush1.bf16.msra.mxu0 0
      %2047 = vmatprep.subr.bf16.mxu0 0
      %2048 = vmatpush1.bf16.msra.mxu0 0
      %2049 = vmatprep.subr.bf16.mxu0 0
      %2050 = vmatpush1.bf16.msra.mxu0 0
      %2051 = vmatprep.subr.bf16.mxu0 0
      %2052 = vmatpush1.bf16.msra.mxu0 0
      %2053 = vmatprep.subr.bf16.mxu0 0
      %2054 = vmatpush1.bf16.msra.mxu0 0
      %2055 = vmatprep.subr.bf16.mxu0 0
      %2056 = vmatpush1.bf16.msra.mxu0 0
      %2057 = vmatprep.mubr.bf16.mxu0 0
      %2058 = vmatmul.mubr.bf16.gmra.mrb[0].mxu0 %v1929
      %v2059 = vpop.f32.mrb[0].mxu0
      %v2060 = vadd.f32 0.0, %v2059
      %v2061 = vpop.f32.mrb[0].mxu0
      %v2062 = vpop.f32.mrb[0].mxu0
      %v2063 = vadd.f32 0.0, %v2062
      %v2064 = vpop.f32.mrb[0].mxu0
      %2065 = vmatprep.mubr.bf16.mxu0 0
      %2066 = vmatmul.mubr.bf16.gmra.mrb[0].mxu0 %v1932
      %v2067 = vpop.f32.mrb[0].mxu0
      %v2068 = vadd.f32 0.0, %v2067
      %v2069 = vpop.f32.mrb[0].mxu0
      %v2070 = vpop.f32.mrb[0].mxu0
      %v2071 = vadd.f32 0.0, %v2070
      %v2072 = vpop.f32.mrb[0].mxu0
      %2073 = vmatprep.mubr.bf16.mxu0 0
      %2074 = vmatmul.mubr.bf16.gmra.mrb[0].mxu0 %v1935
      %v2075 = vpop.f32.mrb[0].mxu0
      %v2076 = vadd.f32 0.0, %v2075
      %v2077 = vpop.f32.mrb[0].mxu0
      %v2078 = vpop.f32.mrb[0].mxu0
      %v2079 = vadd.f32 0.0, %v2078
      %v2080 = vpop.f32.mrb[0].mxu0
      %2081 = vmatprep.mubr.bf16.mxu0 0
      %2082 = vmatmul.mubr.bf16.gmra.mrb[0].mxu0 %v2020
      %v2083 = vpop.f32.mrb[0].mxu0
      %v2084 = vadd.f32 0.0, %v2083
      %v2085 = vpop.f32.mrb[0].mxu0
      %v2086 = vpop.f32.mrb[0].mxu0
      %v2087 = vadd.f32 0.0, %v2086
      %v2088 = vpop.f32.mrb[0].mxu0
      %2089 = vdwg.mxu0
      %v2090 = vadd.f32 %v1975, %v2060
      %v2091 = vadd.f32 %v1978, %v2063
      %v2092 = vadd.f32 %v1983, %v2068
      %v2093 = vadd.f32 %v1986, %v2071
      %v2094 = vadd.f32 %v1991, %v2076
      %v2095 = vadd.f32 %v1994, %v2079
      %v2096 = vadd.f32 %v1999, %v2084
      %v2097 = vadd.f32 %v2002, %v2087
      %v2098 = vld [vmem:[%s4] sm:$0x1]
      %v2100 = vlaneseq
      %v2101 = vshrl.u32 %v2100, 7
      %v2102 = vsub.s32 0, %v2101
      %v2103 = vrot.slane %v2098, %v2102
      %v2105 = vadd.f32 %v2090, %v2103
      %v2106 = vadd.f32 %v2091, %v2103
      %v2107 = vadd.f32 %v2092, %v2103
      %v2108 = vadd.f32 %v2093, %v2103
      %v2109 = vadd.f32 %v2094, %v2103
      %v2110 = vadd.f32 %v2095, %v2103
      %v2111 = vadd.f32 %v2096, %v2103
      %v2112 = vadd.f32 %v2097, %v2103
      %vm2113 = vcmp.gt.f32.partialorder %v2105, 0.0
      %vm2114 = vcmp.gt.f32.partialorder %v2106, 0.0
      %vm2115 = vcmp.gt.f32.partialorder %v2107, 0.0
      %vm2116 = vcmp.gt.f32.partialorder %v2108, 0.0
      %vm2117 = vcmp.gt.f32.partialorder %v2109, 0.0
      %vm2118 = vcmp.gt.f32.partialorder %v2110, 0.0
      %vm2119 = vcmp.gt.f32.partialorder %v2111, 0.0
      %vm2120 = vcmp.gt.f32.partialorder %v2112, 0.0
      %v2121 = vmin.f32 %v2105, 0.0
      %v2122 = vmin.f32 %v2106, 0.0
      %v2123 = vmin.f32 %v2107, 0.0
      %v2124 = vmin.f32 %v2108, 0.0
      %v2125 = vmin.f32 %v2109, 0.0
      %v2126 = vmin.f32 %v2110, 0.0
      %v2127 = vmin.f32 %v2111, 0.0
      %v2128 = vmin.f32 %v2112, 0.0
      %v2129 = vmul.f32 %v2121, 1.442695
      %v2130 = vpow.pop %v2129
      %v2131 = vmul.f32 %v2122, 1.442695
      %v2132 = vpow.pop %v2131
      %v2133 = vmul.f32 %v2123, 1.442695
      %v2134 = vpow.pop %v2133
      %v2135 = vmul.f32 %v2124, 1.442695
      %v2136 = vpow.pop %v2135
      %v2137 = vmul.f32 %v2125, 1.442695
      %v2138 = vpow.pop %v2137
      %v2139 = vmul.f32 %v2126, 1.442695
      %v2140 = vpow.pop %v2139
      %v2141 = vmul.f32 %v2127, 1.442695
      %v2142 = vpow.pop %v2141
      %v2143 = vmul.f32 %v2128, 1.442695
      %v2144 = vpow.pop %v2143
      %v2145 = vsub.f32 %v2130, 1.0
      %v2146 = vsub.f32 %v2132, 1.0
      %v2147 = vsub.f32 %v2134, 1.0
      %v2148 = vsub.f32 %v2136, 1.0
      %v2149 = vsub.f32 %v2138, 1.0
      %v2150 = vsub.f32 %v2140, 1.0
      %v2151 = vsub.f32 %v2142, 1.0
      %v2152 = vsub.f32 %v2144, 1.0
      %v2153 = vsel %vm2113, %v2105, %v2145
      %v2154 = vsel %vm2114, %v2106, %v2146
      %v2155 = vsel %vm2115, %v2107, %v2147
      %v2156 = vsel %vm2116, %v2108, %v2148
      %v2157 = vsel %vm2117, %v2109, %v2149
      %v2158 = vsel %vm2118, %v2110, %v2150
      %v2159 = vsel %vm2119, %v2111, %v2151
      %v2160 = vsel %vm2120, %v2112, %v2152
      %vm2161 = vcmask 31744
      %2162 = vst.msk [vmem:[#allocation3] sm:$0xff] %vm2161, 0.0
      %2163 = vst.msk [vmem:[#allocation3 + $0x8] sm:$0xff] %vm2161, 0.0
      %vm2164 = vcmask 25600
      %2165 = vst.msk [vmem:[#allocation3 + $0x10] sm:$0x3] %vm2164, 0.0
      %s2166 = scalar_lea.vmem [#allocation3], 120
      %2167 = vst.msk [vmem:[%s2166] sm:$0xff] %vm2161, 0.0
      %2168 = vst.msk [vmem:[%s2166 + $0x8] sm:$0xff] %vm2161, 0.0
      %2169 = vst.msk [vmem:[%s2166 + $0x10] sm:$0x3] %vm2164, 0.0
      %vm2170 = vcmask 24576
      %2171 = vst.msk [vmem:[#allocation3] sm:$0x1] %vm2170, 0.0
      %2172 = vst.msk [vmem:[#allocation3 + $0x18] sm:$0x1] %vm2170, 0.0
      %2173 = vst.msk [vmem:[#allocation3 + $0x30] sm:$0x1] %vm2170, 0.0
      %2174 = vst.msk [vmem:[#allocation3 + $0x48] sm:$0x1] %vm2170, 0.0
      %2175 = vst.msk [vmem:[#allocation3 + $0x60] sm:$0x1] %vm2170, 0.0
      %2176 = vst.msk [vmem:[#allocation3 + $0x78] sm:$0x1] %vm2170, 0.0
      %2177 = vst.msk [vmem:[#allocation3 + $0x11] sm:$0x1] %vm2170, 0.0
      %2178 = vst.msk [vmem:[#allocation3 + $0x29] sm:$0x1] %vm2170, 0.0
      %2179 = vst.msk [vmem:[#allocation3 + $0x41] sm:$0x1] %vm2170, 0.0
      %2180 = vst.msk [vmem:[#allocation3 + $0x59] sm:$0x1] %vm2170, 0.0
      %2181 = vst.msk [vmem:[#allocation3 + $0x71] sm:$0x1] %vm2170, 0.0
      %2182 = vst.msk [vmem:[#allocation3 + $0x89] sm:$0x1] %vm2170, 0.0
      %s2183 = scalar_lea.vmem [#allocation3], 24
      %2184 = vst.msk [vmem:[%s2183 + $0x1] sm:$0xff] %vm2161, %v2153
      %2185 = vst.msk [vmem:[%s2183 + $0x9] sm:$0xff] %vm2161, %v2154
      %2186 = vst.msk [vmem:[%s2183 + $0x19] sm:$0xff] %vm2161, %v2155
      %2187 = vst.msk [vmem:[%s2183 + $0x21] sm:$0xff] %vm2161, %v2156
      %2188 = vst.msk [vmem:[%s2183 + $0x31] sm:$0xff] %vm2161, %v2157
      %2189 = vst.msk [vmem:[%s2183 + $0x39] sm:$0xff] %vm2161, %v2158
      %2190 = vst.msk [vmem:[%s2183 + $0x49] sm:$0xff] %vm2161, %v2159
      %2191 = vst.msk [vmem:[%s2183 + $0x51] sm:$0xff] %vm2161, %v2160
      %v2192 = vld [vmem:[#allocation3] sm:$0xff]
      %v2193 = vld [vmem:[#allocation3 + $0x8] sm:$0xff]
      %v2194 = vld [vmem:[#allocation3 + $0x10] sm:$0x3]
      %v2195 = vld [vmem:[#allocation3 + $0x18] sm:$0xff]
      %v2196 = vld [vmem:[#allocation3 + $0x20] sm:$0xff]
      %v2197 = vld [vmem:[#allocation3 + $0x28] sm:$0x3]
      %v2198 = vld [vmem:[#allocation3 + $0x30] sm:$0xff]
      %v2199 = vld [vmem:[#allocation3 + $0x38] sm:$0xff]
      %v2200 = vld [vmem:[#allocation3 + $0x40] sm:$0x3]
      %v2201 = vld [vmem:[#allocation3 + $0x48] sm:$0xff]
      %v2202 = vld [vmem:[#allocation3 + $0x50] sm:$0xff]
      %v2203 = vld [vmem:[#allocation3 + $0x58] sm:$0x3]
      %v2204 = vld [vmem:[#allocation3 + $0x60] sm:$0xff]
      %v2205 = vld [vmem:[#allocation3 + $0x68] sm:$0xff]
      %v2206 = vld [vmem:[#allocation3 + $0x70] sm:$0x3]
      %v2222 = vrot.slane %v2192, 1
      %v2223 = vrot.slane %v2193, 1
      %v2224 = vsel %vm460, %v2222, %v2223
      %v2225 = vrot.slane %v2194, 1
      %v2226 = vsel %vm460, %v2223, %v2225
      %v2227 = vrot.slane %v2195, 1
      %v2228 = vrot.slane %v2196, 1
      %v2229 = vsel %vm460, %v2227, %v2228
      %v2230 = vrot.slane %v2197, 1
      %v2231 = vsel %vm460, %v2228, %v2230
      %v2232 = vrot.slane %v2198, 1
      %v2233 = vrot.slane %v2199, 1
      %v2234 = vsel %vm460, %v2232, %v2233
      %v2235 = vrot.slane %v2200, 1
      %v2236 = vsel %vm460, %v2233, %v2235
      %v2237 = vrot.slane %v2201, 1
      %v2238 = vrot.slane %v2202, 1
      %v2239 = vsel %vm460, %v2237, %v2238
      %v2240 = vrot.slane %v2203, 1
      %v2241 = vsel %vm460, %v2238, %v2240
      %v2242 = vrot.slane %v2204, 1
      %v2243 = vrot.slane %v2205, 1
      %v2244 = vsel %vm460, %v2242, %v2243
      %v2245 = vrot.slane %v2206, 1
      %v2246 = vsel %vm460, %v2243, %v2245
      %2247 = vrot.lane.b32.xlu0 %v2224, 4
      %v2248 = vpop.permute.xlu0 %2247
      %2249 = vrot.lane.b32.xlu0 %v2226, 4
      %v2250 = vpop.permute.xlu0 %2249
      %2251 = vrot.lane.b32.xlu0 %v2229, 4
      %v2252 = vpop.permute.xlu0 %2251
      %2253 = vrot.lane.b32.xlu0 %v2231, 4
      %v2254 = vpop.permute.xlu0 %2253
      %2255 = vrot.lane.b32.xlu0 %v2234, 4
      %v2256 = vpop.permute.xlu0 %2255
      %2257 = vrot.lane.b32.xlu0 %v2236, 4
      %v2258 = vpop.permute.xlu0 %2257
      %2259 = vrot.lane.b32.xlu0 %v2239, 4
      %v2260 = vpop.permute.xlu0 %2259
      %2261 = vrot.lane.b32.xlu0 %v2241, 4
      %v2262 = vpop.permute.xlu0 %2261
      %2263 = vrot.lane.b32.xlu0 %v2244, 4
      %v2264 = vpop.permute.xlu0 %2263
      %2265 = vrot.lane.b32.xlu0 %v2246, 4
      %v2266 = vpop.permute.xlu0 %2265
      %v2277 = vrot.slane %v2192, 2
      %v2278 = vrot.slane %v2193, 2
      %v2279 = vsel %vm648, %v2277, %v2278
      %v2280 = vrot.slane %v2194, 2
      %v2281 = vsel %vm648, %v2278, %v2280
      %v2282 = vrot.slane %v2195, 2
      %v2283 = vrot.slane %v2196, 2
      %v2284 = vsel %vm648, %v2282, %v2283
      %v2285 = vrot.slane %v2197, 2
      %v2286 = vsel %vm648, %v2283, %v2285
      %v2287 = vrot.slane %v2198, 2
      %v2288 = vrot.slane %v2199, 2
      %v2289 = vsel %vm648, %v2287, %v2288
      %v2290 = vrot.slane %v2200, 2
      %v2291 = vsel %vm648, %v2288, %v2290
      %v2292 = vrot.slane %v2201, 2
      %v2293 = vrot.slane %v2202, 2
      %v2294 = vsel %vm648, %v2292, %v2293
      %v2295 = vrot.slane %v2203, 2
      %v2296 = vsel %vm648, %v2293, %v2295
      %v2297 = vrot.slane %v2204, 2
      %v2298 = vrot.slane %v2205, 2
      %v2299 = vsel %vm648, %v2297, %v2298
      %v2300 = vrot.slane %v2206, 2
      %v2301 = vsel %vm648, %v2298, %v2300
      %2302 = vrot.lane.b32.xlu0 %v2279, 8
      %v2303 = vpop.permute.xlu0 %2302
      %2304 = vrot.lane.b32.xlu0 %v2281, 8
      %v2305 = vpop.permute.xlu0 %2304
      %2306 = vrot.lane.b32.xlu0 %v2284, 8
      %v2307 = vpop.permute.xlu0 %2306
      %2308 = vrot.lane.b32.xlu0 %v2286, 8
      %v2309 = vpop.permute.xlu0 %2308
      %2310 = vrot.lane.b32.xlu0 %v2289, 8
      %v2311 = vpop.permute.xlu0 %2310
      %2312 = vrot.lane.b32.xlu0 %v2291, 8
      %v2313 = vpop.permute.xlu0 %2312
      %2314 = vrot.lane.b32.xlu0 %v2294, 8
      %v2315 = vpop.permute.xlu0 %2314
      %2316 = vrot.lane.b32.xlu0 %v2296, 8
      %v2317 = vpop.permute.xlu0 %2316
      %2318 = vrot.lane.b32.xlu0 %v2299, 8
      %v2319 = vpop.permute.xlu0 %2318
      %2320 = vrot.lane.b32.xlu0 %v2301, 8
      %v2321 = vpop.permute.xlu0 %2320
      %v2332 = vsel %vm2161, %v2192, %v2248
      %v2333 = vsel %vm2161, %v2193, %v2250
      %v2334 = vsel %vm2161, %v2195, %v2252
      %v2335 = vsel %vm2161, %v2196, %v2254
      %v2336 = vsel %vm2161, %v2198, %v2256
      %v2337 = vsel %vm2161, %v2199, %v2258
      %v2338 = vsel %vm2161, %v2201, %v2260
      %v2339 = vsel %vm2161, %v2202, %v2262
      %v2340 = vsel %vm2161, %v2204, %v2264
      %v2341 = vsel %vm2161, %v2205, %v2266
      %v2342 = vsel %vm1475, %v2332, %v2303
      %v2343 = vsel %vm1475, %v2333, %v2305
      %v2344 = vsel %vm1475, %v2334, %v2307
      %v2345 = vsel %vm1475, %v2335, %v2309
      %v2346 = vsel %vm1475, %v2336, %v2311
      %v2347 = vsel %vm1475, %v2337, %v2313
      %v2348 = vsel %vm1475, %v2338, %v2315
      %v2349 = vsel %vm1475, %v2339, %v2317
      %v2350 = vsel %vm1475, %v2340, %v2319
      %v2351 = vsel %vm1475, %v2341, %v2321
      %v2352 = vld [vmem:[%s5] sm:$0xf]
      %v2353 = vld [vmem:[%s5 + $0x4] sm:$0x3]
      %v2354 = vpack.c.bf16 %v2343, %v2342
      %v2355 = vpack.c.bf16 %v2347, %v2346
      %s2356 = scalar_lea.vmem %s5, 8
      %v2357 = vld [vmem:[%s2356] sm:$0xf]
      %v2358 = vld [vmem:[%s2356 + $0x4] sm:$0x3]
      %v2359 = vpack.c.bf16 %v2345, %v2344
      %v2360 = vpack.c.bf16 %v2349, %v2348
      %v2363 = vunpack.c.l.b16 %v2357
      %v2364 = vunpack.c.l.b16 %v2358
      %v2365 = vpack.c.b16 %v2364, %v2363
      %vm2366 = vcmask 97280
      %v2368 = vsel %vm2366, %v2359, 0
      %v2371 = vsel %vm2366, %v2360, 0
      %v2374 = vsel %vm648, %v2365, 0
      %2376 = vmatprep.subr.bf16.mxu0 0
      %2377 = vmatpush1.bf16.msra.mxu0 %v2374
      %2378 = vmatprep.subr.bf16.mxu0 0
      %2379 = vmatpush1.bf16.msra.mxu0 0
      %2380 = vmatprep.subr.bf16.mxu0 0
      %2381 = vmatpush1.bf16.msra.mxu0 0
      %2382 = vmatprep.subr.bf16.mxu0 0
      %2383 = vmatpush1.bf16.msra.mxu0 0
      %2384 = vmatprep.subr.bf16.mxu0 0
      %2385 = vmatpush1.bf16.msra.mxu0 0
      %2386 = vmatprep.subr.bf16.mxu0 0
      %2387 = vmatpush1.bf16.msra.mxu0 0
      %2388 = vmatprep.subr.bf16.mxu0 0
      %2389 = vmatpush1.bf16.msra.mxu0 0
      %2390 = vmatprep.subr.bf16.mxu0 0
      %2391 = vmatpush1.bf16.msra.mxu0 0
      %2392 = vmatprep.subr.bf16.mxu0 0
      %2393 = vmatpush1.bf16.msra.mxu0 0
      %2394 = vmatprep.subr.bf16.mxu0 0
      %2395 = vmatpush1.bf16.msra.mxu0 0
      %2396 = vmatprep.subr.bf16.mxu0 0
      %2397 = vmatpush1.bf16.msra.mxu0 0
      %2398 = vmatprep.subr.bf16.mxu0 0
      %2399 = vmatpush1.bf16.msra.mxu0 0
      %2400 = vmatprep.subr.bf16.mxu0 0
      %2401 = vmatpush1.bf16.msra.mxu0 0
      %2402 = vmatprep.subr.bf16.mxu0 0
      %2403 = vmatpush1.bf16.msra.mxu0 0
      %2404 = vmatprep.subr.bf16.mxu0 0
      %2405 = vmatpush1.bf16.msra.mxu0 0
      %2406 = vmatprep.subr.bf16.mxu0 0
      %2407 = vmatpush1.bf16.msra.mxu0 0
      %2408 = vmatprep.mubr.bf16.mxu0 0
      %2409 = vmatmul.mubr.bf16.gmra.mrb[0].mxu0 %v2368
      %v2410 = vpop.f32.mrb[0].mxu0
      %v2411 = vadd.f32 0.0, %v2410
      %v2412 = vpop.f32.mrb[0].mxu0
      %v2413 = vpop.f32.mrb[0].mxu0
      %v2414 = vadd.f32 0.0, %v2413
      %v2415 = vpop.f32.mrb[0].mxu0
      %2416 = vmatprep.mubr.bf16.mxu0 0
      %2417 = vmatmul.mubr.bf16.gmra.mrb[0].mxu0 %v2371
      %v2418 = vpop.f32.mrb[0].mxu0
      %v2419 = vadd.f32 0.0, %v2418
      %v2420 = vpop.f32.mrb[0].mxu0
      %v2421 = vpop.f32.mrb[0].mxu0
      %v2422 = vadd.f32 0.0, %v2421
      %v2423 = vpop.f32.mrb[0].mxu0
      %2424 = vdwg.mxu0
      %v2427 = vunpack.c.l.b16 %v2352
      %v2428 = vunpack.c.l.b16 %v2353
      %v2429 = vpack.c.b16 %v2428, %v2427
      %v2431 = vsel %vm2366, %v2354, 0
      %v2434 = vsel %vm2366, %v2355, 0
      %v2437 = vsel %vm648, %v2429, 0
      %2439 = vmatprep.subr.bf16.mxu0 0
      %2440 = vmatpush1.bf16.msra.mxu0 %v2437
      %2441 = vmatprep.subr.bf16.mxu0 0
      %2442 = vmatpush1.bf16.msra.mxu0 0
      %2443 = vmatprep.subr.bf16.mxu0 0
      %2444 = vmatpush1.bf16.msra.mxu0 0
      %2445 = vmatprep.subr.bf16.mxu0 0
      %2446 = vmatpush1.bf16.msra.mxu0 0
      %2447 = vmatprep.subr.bf16.mxu0 0
      %2448 = vmatpush1.bf16.msra.mxu0 0
      %2449 = vmatprep.subr.bf16.mxu0 0
      %2450 = vmatpush1.bf16.msra.mxu0 0
      %2451 = vmatprep.subr.bf16.mxu0 0
      %2452 = vmatpush1.bf16.msra.mxu0 0
      %2453 = vmatprep.subr.bf16.mxu0 0
      %2454 = vmatpush1.bf16.msra.mxu0 0
      %2455 = vmatprep.subr.bf16.mxu0 0
      %2456 = vmatpush1.bf16.msra.mxu0 0
      %2457 = vmatprep.subr.bf16.mxu0 0
      %2458 = vmatpush1.bf16.msra.mxu0 0
      %2459 = vmatprep.subr.bf16.mxu0 0
      %2460 = vmatpush1.bf16.msra.mxu0 0
      %2461 = vmatprep.subr.bf16.mxu0 0
      %2462 = vmatpush1.bf16.msra.mxu0 0
      %2463 = vmatprep.subr.bf16.mxu0 0
      %2464 = vmatpush1.bf16.msra.mxu0 0
      %2465 = vmatprep.subr.bf16.mxu0 0
      %2466 = vmatpush1.bf16.msra.mxu0 0
      %2467 = vmatprep.subr.bf16.mxu0 0
      %2468 = vmatpush1.bf16.msra.mxu0 0
      %2469 = vmatprep.subr.bf16.mxu0 0
      %2470 = vmatpush1.bf16.msra.mxu0 0
      %2471 = vmatprep.mubr.bf16.mxu0 0
      %2472 = vmatmul.mubr.bf16.gmra.mrb[0].mxu0 %v2431
      %v2473 = vpop.f32.mrb[0].mxu0
      %v2474 = vadd.f32 %v2411, %v2473
      %v2475 = vpop.f32.mrb[0].mxu0
      %v2476 = vpop.f32.mrb[0].mxu0
      %v2477 = vadd.f32 %v2414, %v2476
      %v2478 = vpop.f32.mrb[0].mxu0
      %2479 = vmatprep.mubr.bf16.mxu0 0
      %2480 = vmatmul.mubr.bf16.gmra.mrb[0].mxu0 %v2434
      %v2481 = vpop.f32.mrb[0].mxu0
      %v2482 = vadd.f32 %v2419, %v2481
      %v2483 = vpop.f32.mrb[0].mxu0
      %v2484 = vpop.f32.mrb[0].mxu0
      %v2485 = vadd.f32 %v2422, %v2484
      %v2486 = vpop.f32.mrb[0].mxu0
      %2487 = vdwg.mxu0
      %s2488 = scalar_lea.vmem %s5, 16
      %v2489 = vld [vmem:[%s2488] sm:$0xf]
      %v2490 = vld [vmem:[%s2488 + $0x4] sm:$0x3]
      %v2491 = vpack.c.bf16 %v2351, %v2350
      %v2494 = vunpack.c.l.b16 %v2489
      %v2495 = vunpack.c.l.b16 %v2490
      %v2496 = vpack.c.b16 %v2495, %v2494
      %v2498 = vsel %vm2366, %v2491, 0
      %v2501 = vsel %vm648, %v2496, 0
      %2503 = vmatprep.subr.bf16.mxu0 0
      %2504 = vmatpush1.bf16.msra.mxu0 %v2501
      %2505 = vmatprep.subr.bf16.mxu0 0
      %2506 = vmatpush1.bf16.msra.mxu0 0
      %2507 = vmatprep.subr.bf16.mxu0 0
      %2508 = vmatpush1.bf16.msra.mxu0 0
      %2509 = vmatprep.subr.bf16.mxu0 0
      %2510 = vmatpush1.bf16.msra.mxu0 0
      %2511 = vmatprep.subr.bf16.mxu0 0
      %2512 = vmatpush1.bf16.msra.mxu0 0
      %2513 = vmatprep.subr.bf16.mxu0 0
      %2514 = vmatpush1.bf16.msra.mxu0 0
      %2515 = vmatprep.subr.bf16.mxu0 0
      %2516 = vmatpush1.bf16.msra.mxu0 0
      %2517 = vmatprep.subr.bf16.mxu0 0
      %2518 = vmatpush1.bf16.msra.mxu0 0
      %2519 = vmatprep.subr.bf16.mxu0 0
      %2520 = vmatpush1.bf16.msra.mxu0 0
      %2521 = vmatprep.subr.bf16.mxu0 0
      %2522 = vmatpush1.bf16.msra.mxu0 0
      %2523 = vmatprep.subr.bf16.mxu0 0
      %2524 = vmatpush1.bf16.msra.mxu0 0
      %2525 = vmatprep.subr.bf16.mxu0 0
      %2526 = vmatpush1.bf16.msra.mxu0 0
      %2527 = vmatprep.subr.bf16.mxu0 0
      %2528 = vmatpush1.bf16.msra.mxu0 0
      %2529 = vmatprep.subr.bf16.mxu0 0
      %2530 = vmatpush1.bf16.msra.mxu0 0
      %2531 = vmatprep.subr.bf16.mxu0 0
      %2532 = vmatpush1.bf16.msra.mxu0 0
      %2533 = vmatprep.subr.bf16.mxu0 0
      %2534 = vmatpush1.bf16.msra.mxu0 0
      %2535 = vmatprep.mubr.bf16.mxu0 0
      %2536 = vmatmul.mubr.bf16.gmra.mrb[0].mxu0 %v2434
      %v2537 = vpop.f32.mrb[0].mxu0
      %v2538 = vadd.f32 0.0, %v2537
      %v2539 = vpop.f32.mrb[0].mxu0
      %v2540 = vpop.f32.mrb[0].mxu0
      %v2541 = vadd.f32 0.0, %v2540
      %v2542 = vpop.f32.mrb[0].mxu0
      %2543 = vmatprep.mubr.bf16.mxu0 0
      %2544 = vmatmul.mubr.bf16.gmra.mrb[0].mxu0 %v2498
      %v2545 = vpop.f32.mrb[0].mxu0
      %v2546 = vadd.f32 0.0, %v2545
      %v2547 = vpop.f32.mrb[0].mxu0
      %v2548 = vpop.f32.mrb[0].mxu0
      %v2549 = vadd.f32 0.0, %v2548
      %v2550 = vpop.f32.mrb[0].mxu0
      %2551 = vdwg.mxu0
      %v2552 = vadd.f32 %v2474, %v2538
      %v2553 = vadd.f32 %v2477, %v2541
      %v2554 = vadd.f32 %v2482, %v2546
      %v2555 = vadd.f32 %v2485, %v2549
      %v2556 = vld [vmem:[%s6] sm:$0x1]
      %v2558 = vlaneseq
      %v2559 = vshrl.u32 %v2558, 7
      %v2560 = vsub.s32 0, %v2559
      %v2561 = vrot.slane %v2556, %v2560
      %v2563 = vadd.f32 %v2552, %v2561
      %v2564 = vadd.f32 %v2553, %v2561
      %v2565 = vadd.f32 %v2554, %v2561
      %v2566 = vadd.f32 %v2555, %v2561
      %vm2567 = vcmp.gt.f32.partialorder %v2563, 0.0
      %vm2568 = vcmp.gt.f32.partialorder %v2564, 0.0
      %vm2569 = vcmp.gt.f32.partialorder %v2565, 0.0
      %vm2570 = vcmp.gt.f32.partialorder %v2566, 0.0
      %v2571 = vmin.f32 %v2563, 0.0
      %v2572 = vmin.f32 %v2564, 0.0
      %v2573 = vmin.f32 %v2565, 0.0
      %v2574 = vmin.f32 %v2566, 0.0
      %v2575 = vmul.f32 %v2571, 1.442695
      %v2576 = vpow.pop %v2575
      %v2577 = vmul.f32 %v2572, 1.442695
      %v2578 = vpow.pop %v2577
      %v2579 = vmul.f32 %v2573, 1.442695
      %v2580 = vpow.pop %v2579
      %v2581 = vmul.f32 %v2574, 1.442695
      %v2582 = vpow.pop %v2581
      %v2583 = vsub.f32 %v2576, 1.0
      %v2584 = vsub.f32 %v2578, 1.0
      %v2585 = vsub.f32 %v2580, 1.0
      %v2586 = vsub.f32 %v2582, 1.0
      %v2587 = vsel %vm2567, %v2563, %v2583
      %v2588 = vsel %vm2568, %v2564, %v2584
      %v2589 = vsel %vm2569, %v2565, %v2585
      %v2590 = vsel %vm2570, %v2566, %v2586
      %v2591 = vld [vmem:[%s7] sm:$0xff]
      %v2592 = vld [vmem:[%s7 + $0x8] sm:$0xff]
      %v2593 = vld [vmem:[%s7 + $0x10] sm:$0xff]
      %v2594 = vld [vmem:[%s7 + $0x18] sm:$0xff]
      %v2596 = vsel %vm836, %v2591, 0
      %v2599 = vsel %vm836, %v2592, 0
      %v2602 = vsel %vm836, %v2593, 0
      %v2605 = vsel %vm836, %v2594, 0
      %2607 = vmatprep.subr.mxu0 0.0
      %2608 = vmatpush1.msra.mxu0 %v2587
      %2609 = vmatprep.subr.mxu0 0.0
      %2610 = vmatpush1.msra.mxu0 %v2588
      %2611 = vmatprep.subr.mxu0 0.0
      %2612 = vmatpush1.msra.mxu0 0.0
      %2613 = vmatprep.subr.mxu0 0.0
      %2614 = vmatpush1.msra.mxu0 0.0
      %2615 = vmatprep.subr.mxu0 0.0
      %2616 = vmatpush1.msra.mxu0 0.0
      %2617 = vmatprep.subr.mxu0 0.0
      %2618 = vmatpush1.msra.mxu0 0.0
      %2619 = vmatprep.subr.mxu0 0.0
      %2620 = vmatpush1.msra.mxu0 0.0
      %2621 = vmatprep.subr.mxu0 0.0
      %2622 = vmatpush1.msra.mxu0 0.0
      %2623 = vmatprep.subr.mxu0 0.0
      %2624 = vmatpush1.msra.mxu0 0.0
      %2625 = vmatprep.subr.mxu0 0.0
      %2626 = vmatpush1.msra.mxu0 0.0
      %2627 = vmatprep.subr.mxu0 0.0
      %2628 = vmatpush1.msra.mxu0 0.0
      %2629 = vmatprep.subr.mxu0 0.0
      %2630 = vmatpush1.msra.mxu0 0.0
      %2631 = vmatprep.subr.mxu0 0.0
      %2632 = vmatpush1.msra.mxu0 0.0
      %2633 = vmatprep.subr.mxu0 0.0
      %2634 = vmatpush1.msra.mxu0 0.0
      %2635 = vmatprep.subr.mxu0 0.0
      %2636 = vmatpush1.msra.mxu0 0.0
      %2637 = vmatprep.subr.mxu0 0.0
      %2638 = vmatpush1.msra.mxu0 0.0
      %2639 = vmatprep.subr.mxu0 0.0
      %2640 = vmatpush1.msra.mxu0 0.0
      %2641 = vmatprep.subr.mxu0 0.0
      %2642 = vmatpush1.msra.mxu0 0.0
      %2643 = vmatprep.subr.mxu0 0.0
      %2644 = vmatpush1.msra.mxu0 0.0
      %2645 = vmatprep.subr.mxu0 0.0
      %2646 = vmatpush1.msra.mxu0 0.0
      %2647 = vmatprep.subr.mxu0 0.0
      %2648 = vmatpush1.msra.mxu0 0.0
      %2649 = vmatprep.subr.mxu0 0.0
      %2650 = vmatpush1.msra.mxu0 0.0
      %2651 = vmatprep.subr.mxu0 0.0
      %2652 = vmatpush1.msra.mxu0 0.0
      %2653 = vmatprep.subr.mxu0 0.0
      %2654 = vmatpush1.msra.mxu0 0.0
      %2655 = vmatprep.subr.mxu0 0.0
      %2656 = vmatpush1.msra.mxu0 0.0
      %2657 = vmatprep.subr.mxu0 0.0
      %2658 = vmatpush1.msra.mxu0 0.0
      %2659 = vmatprep.subr.mxu0 0.0
      %2660 = vmatpush1.msra.mxu0 0.0
      %2661 = vmatprep.subr.mxu0 0.0
      %2662 = vmatpush1.msra.mxu0 0.0
      %2663 = vmatprep.subr.mxu0 0.0
      %2664 = vmatpush1.msra.mxu0 0.0
      %2665 = vmatprep.subr.mxu0 0.0
      %2666 = vmatpush1.msra.mxu0 0.0
      %2667 = vmatprep.subr.mxu0 0.0
      %2668 = vmatpush1.msra.mxu0 0.0
      %2669 = vmatprep.subr.mxu0 0.0
      %2670 = vmatpush1.msra.mxu0 0.0
      %2671 = vmatprep.mubr.f32.mxu0 0.0
      %2672 = vmatmul.mubr.f32.gmra.mrb[0].mxu0 %v2596
      %v2673 = vpop.f32.mrb[0].mxu0
      %v2674 = vadd.f32 0.0, %v2673
      %v2675 = vpop.f32.mrb[0].mxu0
      %2676 = vmatprep.mubr.f32.mxu0 0.0
      %2677 = vmatmul.mubr.f32.gmra.mrb[0].mxu0 %v2599
      %v2678 = vpop.f32.mrb[0].mxu0
      %v2679 = vadd.f32 0.0, %v2678
      %v2680 = vpop.f32.mrb[0].mxu0
      %2681 = vmatprep.mubr.f32.mxu0 0.0
      %2682 = vmatmul.mubr.f32.gmra.mrb[0].mxu0 %v2602
      %v2683 = vpop.f32.mrb[0].mxu0
      %v2684 = vadd.f32 0.0, %v2683
      %v2685 = vpop.f32.mrb[0].mxu0
      %2686 = vmatprep.mubr.f32.mxu0 0.0
      %2687 = vmatmul.mubr.f32.gmra.mrb[0].mxu0 %v2605
      %v2688 = vpop.f32.mrb[0].mxu0
      %v2689 = vadd.f32 0.0, %v2688
      %v2690 = vpop.f32.mrb[0].mxu0
      %2691 = vdwg.mxu0
      %2692 = vmatprep.subr.mxu0 0.0
      %2693 = vmatpush1.msra.mxu0 %v2589
      %2694 = vmatprep.subr.mxu0 0.0
      %2695 = vmatpush1.msra.mxu0 %v2590
      %2696 = vmatprep.subr.mxu0 0.0
      %2697 = vmatpush1.msra.mxu0 0.0
      %2698 = vmatprep.subr.mxu0 0.0
      %2699 = vmatpush1.msra.mxu0 0.0
      %2700 = vmatprep.subr.mxu0 0.0
      %2701 = vmatpush1.msra.mxu0 0.0
      %2702 = vmatprep.subr.mxu0 0.0
      %2703 = vmatpush1.msra.mxu0 0.0
      %2704 = vmatprep.subr.mxu0 0.0
      %2705 = vmatpush1.msra.mxu0 0.0
      %2706 = vmatprep.subr.mxu0 0.0
      %2707 = vmatpush1.msra.mxu0 0.0
      %2708 = vmatprep.subr.mxu0 0.0
      %2709 = vmatpush1.msra.mxu0 0.0
      %2710 = vmatprep.subr.mxu0 0.0
      %2711 = vmatpush1.msra.mxu0 0.0
      %2712 = vmatprep.subr.mxu0 0.0
      %2713 = vmatpush1.msra.mxu0 0.0
      %2714 = vmatprep.subr.mxu0 0.0
      %2715 = vmatpush1.msra.mxu0 0.0
      %2716 = vmatprep.subr.mxu0 0.0
      %2717 = vmatpush1.msra.mxu0 0.0
      %2718 = vmatprep.subr.mxu0 0.0
      %2719 = vmatpush1.msra.mxu0 0.0
      %2720 = vmatprep.subr.mxu0 0.0
      %2721 = vmatpush1.msra.mxu0 0.0
      %2722 = vmatprep.subr.mxu0 0.0
      %2723 = vmatpush1.msra.mxu0 0.0
      %2724 = vmatprep.subr.mxu0 0.0
      %2725 = vmatpush1.msra.mxu0 0.0
      %2726 = vmatprep.subr.mxu0 0.0
      %2727 = vmatpush1.msra.mxu0 0.0
      %2728 = vmatprep.subr.mxu0 0.0
      %2729 = vmatpush1.msra.mxu0 0.0
      %2730 = vmatprep.subr.mxu0 0.0
      %2731 = vmatpush1.msra.mxu0 0.0
      %2732 = vmatprep.subr.mxu0 0.0
      %2733 = vmatpush1.msra.mxu0 0.0
      %2734 = vmatprep.subr.mxu0 0.0
      %2735 = vmatpush1.msra.mxu0 0.0
      %2736 = vmatprep.subr.mxu0 0.0
      %2737 = vmatpush1.msra.mxu0 0.0
      %2738 = vmatprep.subr.mxu0 0.0
      %2739 = vmatpush1.msra.mxu0 0.0
      %2740 = vmatprep.subr.mxu0 0.0
      %2741 = vmatpush1.msra.mxu0 0.0
      %2742 = vmatprep.subr.mxu0 0.0
      %2743 = vmatpush1.msra.mxu0 0.0
      %2744 = vmatprep.subr.mxu0 0.0
      %2745 = vmatpush1.msra.mxu0 0.0
      %2746 = vmatprep.subr.mxu0 0.0
      %2747 = vmatpush1.msra.mxu0 0.0
      %2748 = vmatprep.subr.mxu0 0.0
      %2749 = vmatpush1.msra.mxu0 0.0
      %2750 = vmatprep.subr.mxu0 0.0
      %2751 = vmatpush1.msra.mxu0 0.0
      %2752 = vmatprep.subr.mxu0 0.0
      %2753 = vmatpush1.msra.mxu0 0.0
      %2754 = vmatprep.subr.mxu0 0.0
      %2755 = vmatpush1.msra.mxu0 0.0
      %2756 = vmatprep.mubr.f32.mxu0 0.0
      %2757 = vmatmul.mubr.f32.gmra.mrb[0].mxu0 %v2596
      %v2758 = vpop.f32.mrb[0].mxu0
      %v2759 = vadd.f32 0.0, %v2758
      %v2760 = vpop.f32.mrb[0].mxu0
      %2761 = vmatprep.mubr.f32.mxu0 0.0
      %2762 = vmatmul.mubr.f32.gmra.mrb[0].mxu0 %v2599
      %v2763 = vpop.f32.mrb[0].mxu0
      %v2764 = vadd.f32 0.0, %v2763
      %v2765 = vpop.f32.mrb[0].mxu0
      %2766 = vmatprep.mubr.f32.mxu0 0.0
      %2767 = vmatmul.mubr.f32.gmra.mrb[0].mxu0 %v2602
      %v2768 = vpop.f32.mrb[0].mxu0
      %v2769 = vadd.f32 0.0, %v2768
      %v2770 = vpop.f32.mrb[0].mxu0
      %2771 = vmatprep.mubr.f32.mxu0 0.0
      %2772 = vmatmul.mubr.f32.gmra.mrb[0].mxu0 %v2605
      %v2773 = vpop.f32.mrb[0].mxu0
      %v2774 = vadd.f32 0.0, %v2773
      %v2775 = vpop.f32.mrb[0].mxu0
      %2776 = vdwg.mxu0
      %2777 = vst.msk [vmem:[%s305] sm:$0xff] %vm2161, %v2674
      %2778 = vst.msk [vmem:[%s305 + $0x8] sm:$0xff] %vm2161, %v2679
      %2779 = vst.msk [vmem:[%s305 + $0x10] sm:$0xff] %vm2161, %v2684
      %2780 = vst.msk [vmem:[%s305 + $0x18] sm:$0xff] %vm2161, %v2689
      %2781 = vst.msk [vmem:[%s305 + $0x20] sm:$0xff] %vm2161, %v2759
      %2782 = vst.msk [vmem:[%s305 + $0x28] sm:$0xff] %vm2161, %v2764
      %2783 = vst.msk [vmem:[%s305 + $0x30] sm:$0xff] %vm2161, %v2769
      %2784 = vst.msk [vmem:[%s305 + $0x38] sm:$0xff] %vm2161, %v2774
      %p2785 = scmp.lt.s32.totalorder %s19, 1
      %s2786 = scalar_select %p2785, %s19, 1
      %s2787 = smul.addr %s2786, 8
      %s2788 = smul.addr %s2787, 8
      %s2789 = scalar_lea.vmem %s8, %s2788
      // Predicated region
      $region53: #{slicing_forward.1} parent=51 // pred_check
        %p2790 = pneg %p210
      $region54: #{slicing_forward.1} parent=51 // pred_check_branch
        %2792 = sbr.rel (%p2790) target = $region56
      $region55: #{slicing_forward.1} parent=51 // pred_region
        _
      $region56: #{slicing_forward.1} parent=51 // pred_fallthru
        _
    $region52: #{slicing_forward.1} parent=5 // pred_fallthru
      _
    %p2793 = scmp.le.s32.totalorder 2, %s14
    // Predicated region
    $region57: #{slicing_forward.1} parent=5 // pred_check
      %p2794 = pneg %p2793
    $region58: #{slicing_forward.1} parent=5 // pred_check_branch
      %2796 = sbr.rel (%p2794) target = $region60
    $region59: #{slicing_forward.1} parent=5 // pred_region
      %s2797 = ssub.s32 %s14, 2
      // Predicated region
      $region61: #{slicing_forward.1} parent=59 // pred_check
        %p2798 = pneg %p216
      $region62: #{slicing_forward.1} parent=59 // pred_check_branch
        %2800 = sbr.rel (%p2798) target = $region64
      $region63: #{slicing_forward.1} parent=59 // pred_region
        %p2801 = scmp.lt.s32.totalorder %s20, 1
        %s2802 = scalar_select %p2801, %s20, 1
        %s2803 = smul.addr %s2802, 8
        %s2804 = smul.addr %s2803, 8
        %s2805 = scalar_lea.vmem %s8, %s2804
      $region64: #{slicing_forward.1} parent=59 // pred_fallthru
        _
    $region60: #{slicing_forward.1} parent=5 // pred_fallthru
      _
  $region6: #{slicing_forward.1} parent=0 // loop_footer
    %s18 = sadd.s32 1, %s14
  $region7: #{slicing_forward.1} parent=0 // loop_footer_branch
    %13 = sbr.rel target = $region3
  $region8: #{slicing_forward.1} parent=0 // loop_exit
    _

</llo_original>
